<compile_context>
chip_gen: v6e
topology: v6e:2x2x1
jax: 0.10.0
libtpu: 0.0.40
codegen_flags: <defaults>
</compile_context>

<pallas_src>
import jax
import jax.numpy as jnp
from jax.experimental import pallas as pl
from jax.experimental.pallas import tpu as pltpu


def _round_up(x: int, m: int) -> int:
    return ((x + m - 1) // m) * m


def sae_kernel(x_ref,
               w1_ref, b1_ref,
               w2_ref, b2_ref,
               w3_ref, b3_ref,
               w4_ref, b4_ref,
               o_ref):
    """One batch-tile of the full 4-layer MLP forward pass (all matmuls bf16 MXU)."""
    x = x_ref[...].astype(jnp.bfloat16)                               # in-kernel cast

    h = jnp.dot(x, w1_ref[...], preferred_element_type=jnp.float32) + b1_ref[...]
    h = jax.nn.sigmoid(h).astype(jnp.bfloat16)                        # (tb, e0p)

    h = jnp.dot(h, w2_ref[...], preferred_element_type=jnp.float32) + b2_ref[...]
    h = jax.nn.sigmoid(h).astype(jnp.bfloat16)                        # (tb, e1p)

    h = jnp.dot(h, w3_ref[...], preferred_element_type=jnp.float32) + b3_ref[...]
    h = jax.nn.sigmoid(h).astype(jnp.bfloat16)                        # (tb, e0p)

    out = jnp.dot(h, w4_ref[...], preferred_element_type=jnp.float32) + b4_ref[...]
    o_ref[...] = out.astype(o_ref.dtype)                              # (tb, nb_movies)


def prepare_params(params):
    """Zero-pad hidden dims up to 128 lanes; cast all weights to bf16 (biases stay f32).

    Padding is exactly zero: the extra sigmoid(0)=0.5 hidden columns hit zero-padded
    weight rows in the next layer, so the math matches the unpadded network (up to
    bf16 weight rounding / f32 accumulation order).
    """
    (w1, b1), (w2, b2), (w3, b3), (w4, b4) = params
    nb_movies = w1.shape[0]
    e0, e1 = w1.shape[1], w2.shape[1]
    e0p, e1p = _round_up(e0, 128), _round_up(e1, 128)

    w1p = jnp.pad(w1, ((0, 0), (0, e0p - e0))).astype(jnp.bfloat16)    # (nb_movies, e0p)
    b1p = jnp.pad(b1, ((0, 0), (0, e0p - e0)))                         # (1, e0p) f32
    w2p = jnp.pad(w2, ((0, e0p - e0), (0, e1p - e1))).astype(jnp.bfloat16)
    b2p = jnp.pad(b2, ((0, 0), (0, e1p - e1)))                         # (1, e1p) f32
    w3p = jnp.pad(w3, ((0, e1p - e1), (0, e0p - e0))).astype(jnp.bfloat16)
    b3p = jnp.pad(b3, ((0, 0), (0, e0p - e0)))                         # (1, e0p) f32
    w4p = jnp.pad(w4, ((0, e0p - e0), (0, 0))).astype(jnp.bfloat16)    # (e0p, nb_movies)
    b4p = b4                                                           # (1, nb_movies) f32
    del nb_movies
    return (w1p, b1p), (w2p, b2p), (w3p, b3p), (w4p, b4p)


def _choose_tile_batch(B, nb_movies, out_itemsize, tile_batch):
    """Pick a batch tile: big enough to amortize per-step overhead, small enough to fit
    every generation's default scoped VMEM, and yielding >= 2 grid steps when possible
    (so both v7x TensorCores get work)."""
    if tile_batch is None:
        # Double-buffered per-row bytes: f32 x in + out, plus ~4 padded-128 f32 hidden temps.
        per_row = 2 * nb_movies * 4 + 2 * nb_movies * out_itemsize + 4 * 128 * 4
        budget = 12 << 20   # conservative vs 16 MiB (v5e) / 32 MiB (v6e, v7x) default scoped VMEM
        tile_batch = max(64, min(1024, (budget // per_row) // 8 * 8))
    assert tile_batch % 8 == 0, "tile_batch must be a multiple of 8 (sublane width)"

    tb = min(tile_batch, _round_up(B, 8))
    if tb >= B and B > 8:
        # Single-step grid would idle one v7x TensorCore -> split the batch in two.
        tb = _round_up(pl.cdiv(B, 2), 8)
    return tb


def sae_forward(x, params, *, tile_batch=None, out_dtype=jnp.float32):
    """SAE forward pass with a Pallas kernel, tiling over the batch axis.

    x        : (B, nb_movies) array (f32 or bf16); cast to bf16 inside the kernel.
    out_dtype: jnp.float32 (module semantics) or jnp.bfloat16 (halves output HBM traffic).
    """
    B, nb_movies = x.shape
    (w1, b1), (w2, b2), (w3, b3), (w4, b4) = prepare_params(params)
    e0p, e1p = w1.shape[1], w2.shape[1]

    tb = _choose_tile_batch(B, nb_movies, jnp.dtype(out_dtype).itemsize, tile_batch)
    grid = (pl.cdiv(B, tb),)   # partial last block: inputs padded, output masked on writeback

    # Weights/biases: single full blocks, resident (constant index_map) across all steps.
    def full_spec(shape):
        return pl.BlockSpec(shape, lambda i: (0, 0))

    out = pl.pallas_call(
        sae_kernel,
        out_shape=jax.ShapeDtypeStruct((B, nb_movies), out_dtype),
        grid_spec=pltpu.PrefetchScalarGridSpec(
            num_scalar_prefetch=0,
            grid=grid,
            in_specs=[
                pl.BlockSpec((tb, nb_movies), lambda i: (i, 0)),       # x tile (f32 in HBM)
                full_spec((nb_movies, e0p)), full_spec((1, e0p)),      # fc1 (w bf16, b f32)
                full_spec((e0p, e1p)),       full_spec((1, e1p)),      # fc2
                full_spec((e1p, e0p)),       full_spec((1, e0p)),      # fc3
                full_spec((e0p, nb_movies)), full_spec((1, nb_movies)),  # fc4
            ],
            out_specs=pl.BlockSpec((tb, nb_movies), lambda i: (i, 0)),
        ),
        compiler_params=pltpu.CompilerParams(
            dimension_semantics=("parallel",)),    # batch axis shards across TCs on v7x
    )(x, w1, b1, w2, b2, w3, b3, w4, b4)

    return out


def init_sae_params(key, nb_movies, encoding_layers):
    """Deterministic PyTorch-style Linear init: U(-1/sqrt(fan_in), 1/sqrt(fan_in)).

    Weights are stored as (in_features, out_features); biases as (1, out_features).
    """
    e0, e1 = encoding_layers
    dims = [(nb_movies, e0), (e0, e1), (e1, e0), (e0, nb_movies)]
    params = []
    for (fan_in, fan_out) in dims:
        key, kw, kb = jax.random.split(key, 3)
        bound = 1.0 / (fan_in ** 0.5)
        w = jax.random.uniform(kw, (fan_in, fan_out), jnp.float32, -bound, bound)
        b = jax.random.uniform(kb, (1, fan_out), jnp.float32, -bound, bound)
        params.append((w, b))
    return params


def sae_reference(x, params, *, mixed=False):
    """Pure-JAX reference of the same forward pass (for correctness check).

    mixed=True mimics the kernel's precision (bf16 activations/weights into each matmul,
    f32 accumulation, f32 bias + sigmoid) so the comparison tolerance can stay tight.
    """
    (w1, b1), (w2, b2), (w3, b3), (w4, b4) = params

    def dense(h, w, b):
        if mixed:
            h = h.astype(jnp.bfloat16)
            w = w.astype(jnp.bfloat16)
        return jnp.dot(h, w, preferred_element_type=jnp.float32) + b

    h = jax.nn.sigmoid(dense(x, w1, b1))
    h = jax.nn.sigmoid(dense(h, w2, b2))
    h = jax.nn.sigmoid(dense(h, w3, b3))
    return dense(h, w4, b4)


if __name__ == "__main__":
    # Small but representative shapes: nb_movies=512 (lane-aligned), default-style
    # encoding layers [20, 10]. batch=300 exercises the multi-step grid and the
    # non-divisible (masked) last output block.
    nb_movies = 512
    encoding_layers = [20, 10]
    batch = 300

    key = jax.random.PRNGKey(0)
    key, kx = jax.random.split(key)
    # Ratings-like input in [0, 5].
    x = jax.random.uniform(kx, (batch, nb_movies), jnp.float32, 0.0, 5.0)

    params = init_sae_params(key, nb_movies, encoding_layers)

    # Default mode: f32 output (module semantics).
    out = jax.block_until_ready(sae_forward(x, params))
    assert out.shape == (batch, nb_movies)
    assert out.dtype == jnp.float32

    # Tight check vs a reference with matching mixed precision (kernel math itself).
    ref_mixed = sae_reference(x, params, mixed=True)
    assert jnp.allclose(out, ref_mixed, atol=3e-3, rtol=3e-3), \
        "Pallas output mismatch vs mixed-precision reference"

    # Looser check vs the full-f32 module semantics (bf16 weight/activation rounding only).
    ref_f32 = sae_reference(x, params)
    assert jnp.allclose(out, ref_f32, atol=6e-2, rtol=6e-2), \
        "Pallas output mismatch vs f32 reference"

    # bf16 output mode (halves the dominant HBM stream).
    out_bf16 = jax.block_until_ready(
        sae_forward(x, params, tile_batch=128, out_dtype=jnp.bfloat16))
    assert out_bf16.shape == (batch, nb_movies)
    assert out_bf16.dtype == jnp.bfloat16
    assert jnp.allclose(out_bf16.astype(jnp.float32), ref_mixed, atol=2e-2, rtol=2e-2), \
        "Pallas bf16-output mismatch vs mixed-precision reference"

    print("KERNEL_OK")
</pallas_src>

<mosaic_0001>
module attributes {stable_mosaic.version = 11 : i64} {
  func.func @sae_kernel(%arg0: i32, %arg1: memref<152x512xf32, #tpu.memory_space<vmem>>, %arg2: memref<512x128xbf16, #tpu.memory_space<vmem>>, %arg3: memref<1x128xf32, #tpu.memory_space<vmem>>, %arg4: memref<128x128xbf16, #tpu.memory_space<vmem>>, %arg5: memref<1x128xf32, #tpu.memory_space<vmem>>, %arg6: memref<128x128xbf16, #tpu.memory_space<vmem>>, %arg7: memref<1x128xf32, #tpu.memory_space<vmem>>, %arg8: memref<128x512xbf16, #tpu.memory_space<vmem>>, %arg9: memref<1x512xf32, #tpu.memory_space<vmem>>, %arg10: memref<152x512xf32, #tpu.memory_space<vmem>>) attributes {dimension_semantics = [#tpu.dimension_semantics<parallel>], iteration_bounds = array<i64: 2>, scalar_prefetch = 0 : i64, scratch_operands = 0 : i64, tpu.core_type = #tpu.core_type<tc>, window_params = [{transform_indices = @transform_0, window_bounds = array<i64: 152, 512>}, {pipeline_mode = #tpu.pipeline_mode<synchronous>, transform_indices = @transform_1, window_bounds = array<i64: 512, 128>}, {pipeline_mode = #tpu.pipeline_mode<synchronous>, transform_indices = @transform_2, window_bounds = array<i64: 1, 128>}, {pipeline_mode = #tpu.pipeline_mode<synchronous>, transform_indices = @transform_3, window_bounds = array<i64: 128, 128>}, {pipeline_mode = #tpu.pipeline_mode<synchronous>, transform_indices = @transform_4, window_bounds = array<i64: 1, 128>}, {pipeline_mode = #tpu.pipeline_mode<synchronous>, transform_indices = @transform_5, window_bounds = array<i64: 128, 128>}, {pipeline_mode = #tpu.pipeline_mode<synchronous>, transform_indices = @transform_6, window_bounds = array<i64: 1, 128>}, {pipeline_mode = #tpu.pipeline_mode<synchronous>, transform_indices = @transform_7, window_bounds = array<i64: 128, 512>}, {pipeline_mode = #tpu.pipeline_mode<synchronous>, transform_indices = @transform_8, window_bounds = array<i64: 1, 512>}, {transform_indices = @transform_9, window_bounds = array<i64: 152, 512>}]} {
    %c0 = arith.constant 0 : index
    %c0_0 = arith.constant 0 : index
    %0 = vector.load %arg1[%c0, %c0_0] : memref<152x512xf32, #tpu.memory_space<vmem>>, vector<152x512xf32>
    %1 = arith.truncf %0 : vector<152x512xf32> to vector<152x512xbf16>
    %c0_1 = arith.constant 0 : index
    %c0_2 = arith.constant 0 : index
    %2 = vector.load %arg2[%c0_1, %c0_2] : memref<512x128xbf16, #tpu.memory_space<vmem>>, vector<512x128xbf16>
    %cst = arith.constant dense<0.000000e+00> : vector<152x128xf32>
    %3 = tpu.matmul %1, %2, %cst {dimension_numbers = #tpu.dot_dimension_numbers<[1], [0], [0], [1], [0, 0, 1, 1], [], []>} : vector<152x512xbf16>, vector<512x128xbf16>, vector<152x128xf32> -> vector<152x128xf32>
    %c0_3 = arith.constant 0 : index
    %c0_4 = arith.constant 0 : index
    %4 = vector.load %arg3[%c0_3, %c0_4] : memref<1x128xf32, #tpu.memory_space<vmem>>, vector<1x128xf32>
    %5 = vector.broadcast %4 : vector<1x128xf32> to vector<152x128xf32>
    %6 = arith.addf %3, %5 : vector<152x128xf32>
    %7 = arith.negf %6 : vector<152x128xf32>
    %8 = math.exp %7 : vector<152x128xf32>
    %cst_5 = arith.constant 1.000000e+00 : f32
    %9 = vector.broadcast %cst_5 : f32 to vector<152x128xf32>
    %10 = arith.addf %9, %8 : vector<152x128xf32>
    %11 = arith.divf %9, %10 : vector<152x128xf32>
    %12 = arith.truncf %11 : vector<152x128xf32> to vector<152x128xbf16>
    %c0_6 = arith.constant 0 : index
    %c0_7 = arith.constant 0 : index
    %13 = vector.load %arg4[%c0_6, %c0_7] : memref<128x128xbf16, #tpu.memory_space<vmem>>, vector<128x128xbf16>
    %cst_8 = arith.constant dense<0.000000e+00> : vector<152x128xf32>
    %14 = tpu.matmul %12, %13, %cst_8 {dimension_numbers = #tpu.dot_dimension_numbers<[1], [0], [0], [1], [0, 0, 1, 1], [], []>} : vector<152x128xbf16>, vector<128x128xbf16>, vector<152x128xf32> -> vector<152x128xf32>
    %c0_9 = arith.constant 0 : index
    %c0_10 = arith.constant 0 : index
    %15 = vector.load %arg5[%c0_9, %c0_10] : memref<1x128xf32, #tpu.memory_space<vmem>>, vector<1x128xf32>
    %16 = vector.broadcast %15 : vector<1x128xf32> to vector<152x128xf32>
    %17 = arith.addf %14, %16 : vector<152x128xf32>
    %18 = arith.negf %17 : vector<152x128xf32>
    %19 = math.exp %18 : vector<152x128xf32>
    %cst_11 = arith.constant 1.000000e+00 : f32
    %20 = vector.broadcast %cst_11 : f32 to vector<152x128xf32>
    %21 = arith.addf %20, %19 : vector<152x128xf32>
    %22 = arith.divf %20, %21 : vector<152x128xf32>
    %23 = arith.truncf %22 : vector<152x128xf32> to vector<152x128xbf16>
    %c0_12 = arith.constant 0 : index
    %c0_13 = arith.constant 0 : index
    %24 = vector.load %arg6[%c0_12, %c0_13] : memref<128x128xbf16, #tpu.memory_space<vmem>>, vector<128x128xbf16>
    %cst_14 = arith.constant dense<0.000000e+00> : vector<152x128xf32>
    %25 = tpu.matmul %23, %24, %cst_14 {dimension_numbers = #tpu.dot_dimension_numbers<[1], [0], [0], [1], [0, 0, 1, 1], [], []>} : vector<152x128xbf16>, vector<128x128xbf16>, vector<152x128xf32> -> vector<152x128xf32>
    %c0_15 = arith.constant 0 : index
    %c0_16 = arith.constant 0 : index
    %26 = vector.load %arg7[%c0_15, %c0_16] : memref<1x128xf32, #tpu.memory_space<vmem>>, vector<1x128xf32>
    %27 = vector.broadcast %26 : vector<1x128xf32> to vector<152x128xf32>
    %28 = arith.addf %25, %27 : vector<152x128xf32>
    %29 = arith.negf %28 : vector<152x128xf32>
    %30 = math.exp %29 : vector<152x128xf32>
    %cst_17 = arith.constant 1.000000e+00 : f32
    %31 = vector.broadcast %cst_17 : f32 to vector<152x128xf32>
    %32 = arith.addf %31, %30 : vector<152x128xf32>
    %33 = arith.divf %31, %32 : vector<152x128xf32>
    %34 = arith.truncf %33 : vector<152x128xf32> to vector<152x128xbf16>
    %c0_18 = arith.constant 0 : index
    %c0_19 = arith.constant 0 : index
    %35 = vector.load %arg8[%c0_18, %c0_19] : memref<128x512xbf16, #tpu.memory_space<vmem>>, vector<128x512xbf16>
    %cst_20 = arith.constant dense<0.000000e+00> : vector<152x512xf32>
    %36 = tpu.matmul %34, %35, %cst_20 {dimension_numbers = #tpu.dot_dimension_numbers<[1], [0], [0], [1], [0, 0, 1, 1], [], []>} : vector<152x128xbf16>, vector<128x512xbf16>, vector<152x512xf32> -> vector<152x512xf32>
    %c0_21 = arith.constant 0 : index
    %c0_22 = arith.constant 0 : index
    %37 = vector.load %arg9[%c0_21, %c0_22] : memref<1x512xf32, #tpu.memory_space<vmem>>, vector<1x512xf32>
    %38 = vector.broadcast %37 : vector<1x512xf32> to vector<152x512xf32>
    %39 = arith.addf %36, %38 : vector<152x512xf32>
    %c0_23 = arith.constant 0 : index
    %c0_24 = arith.constant 0 : index
    %40 = vector.load %arg10[%c0_23, %c0_24] : memref<152x512xf32, #tpu.memory_space<vmem>>, vector<152x512xf32>
    tpu.vector_store %arg10[%c0_23, %c0_24], %39 {strides = array<i32>} : memref<152x512xf32, #tpu.memory_space<vmem>>, vector<152x512xf32>,
    return
  }
  func.func @transform_0(%arg0: i32) -> (i32, i32) {
    %c0_i32 = arith.constant 0 : i32
    %c0_i32_0 = arith.constant 0 : i32
    return %arg0, %c0_i32 : i32, i32
  }
  func.func @transform_1(%arg0: i32) -> (i32, i32) {
    %c0_i32 = arith.constant 0 : i32
    %c0_i32_0 = arith.constant 0 : i32
    %c0_i32_1 = arith.constant 0 : i32
    return %c0_i32, %c0_i32_0 : i32, i32
  }
  func.func @transform_2(%arg0: i32) -> (i32, i32) {
    %c0_i32 = arith.constant 0 : i32
    %c0_i32_0 = arith.constant 0 : i32
    %c0_i32_1 = arith.constant 0 : i32
    return %c0_i32, %c0_i32_0 : i32, i32
  }
  func.func @transform_3(%arg0: i32) -> (i32, i32) {
    %c0_i32 = arith.constant 0 : i32
    %c0_i32_0 = arith.constant 0 : i32
    %c0_i32_1 = arith.constant 0 : i32
    return %c0_i32, %c0_i32_0 : i32, i32
  }
  func.func @transform_4(%arg0: i32) -> (i32, i32) {
    %c0_i32 = arith.constant 0 : i32
    %c0_i32_0 = arith.constant 0 : i32
    %c0_i32_1 = arith.constant 0 : i32
    return %c0_i32, %c0_i32_0 : i32, i32
  }
  func.func @transform_5(%arg0: i32) -> (i32, i32) {
    %c0_i32 = arith.constant 0 : i32
    %c0_i32_0 = arith.constant 0 : i32
    %c0_i32_1 = arith.constant 0 : i32
    return %c0_i32, %c0_i32_0 : i32, i32
  }
  func.func @transform_6(%arg0: i32) -> (i32, i32) {
    %c0_i32 = arith.constant 0 : i32
    %c0_i32_0 = arith.constant 0 : i32
    %c0_i32_1 = arith.constant 0 : i32
    return %c0_i32, %c0_i32_0 : i32, i32
  }
  func.func @transform_7(%arg0: i32) -> (i32, i32) {
    %c0_i32 = arith.constant 0 : i32
    %c0_i32_0 = arith.constant 0 : i32
    %c0_i32_1 = arith.constant 0 : i32
    return %c0_i32, %c0_i32_0 : i32, i32
  }
  func.func @transform_8(%arg0: i32) -> (i32, i32) {
    %c0_i32 = arith.constant 0 : i32
    %c0_i32_0 = arith.constant 0 : i32
    %c0_i32_1 = arith.constant 0 : i32
    return %c0_i32, %c0_i32_0 : i32, i32
  }
  func.func @transform_9(%arg0: i32) -> (i32, i32) {
    %c0_i32 = arith.constant 0 : i32
    %c0_i32_0 = arith.constant 0 : i32
    return %arg0, %c0_i32 : i32, i32
  }
}

</mosaic_0001>

<llo_original>
// kernel: tpu_custom_call.1
$region0: #{tpu_custom_call.1}
  #allocation0 [shape = 'u32[]', space=smem, size = 0x4, offset = 0x4, fixed_abs, tag = 'smem constant byte address 0x4 - core index']
  #allocation1 [shape = 'u32[144,128]{1,0:T(1,128)}', space=vmem, size = 0x12000, scoped, tag = 'internal scratch']
  %s0 = inlined_call_operand.hbm [shape: f32[300,512], index: 0, kind: input, shape index: {}]
  %s1 = inlined_call_operand.hbm [shape: bf16[512,128], index: 1, kind: input, shape index: {}]
  %s2 = inlined_call_operand.vmem [shape: f32[1,128], index: 2, kind: input, shape index: {}]
  %s3 = inlined_call_operand.hbm [shape: bf16[128,128], index: 3, kind: input, shape index: {}]
  %s4 = inlined_call_operand.vmem [shape: f32[1,128], index: 4, kind: input, shape index: {}]
  %s5 = inlined_call_operand.hbm [shape: bf16[128,128], index: 5, kind: input, shape index: {}]
  %s6 = inlined_call_operand.vmem [shape: f32[1,128], index: 6, kind: input, shape index: {}]
  %s7 = inlined_call_operand.hbm [shape: bf16[128,512], index: 7, kind: input, shape index: {}]
  %s8 = inlined_call_operand.vmem [shape: f32[1,512], index: 8, kind: input, shape index: {}]
  %s9 = inlined_call_operand.hbm [shape: f32[300,512], index: 9, kind: output, shape index: {}]
  %s10 = sld [smem:[#allocation0]]
  $region89: #{tpu_custom_call.1} parent=0
    _
  %s12 = ssub.s32 1, %s10
  %s13 = scalar_select 0, %s12, %s10
  $region1: #{tpu_custom_call.1} parent=0
    #allocation2 [shape = 'u8[622592]{0}', space=vmem, size = 0x98000, scoped, tag = 'input window, operand 0']
    #allocation3 [shape = 's32[2]{0}', space=sflag, size = 0x8, scoped, tag = 'scoped memory for tpu_custom_call.1']
    #allocation4 [shape = 's32[2]{0}', space=sflag, size = 0x8, scoped, tag = 'scoped memory for tpu_custom_call.1']
    #allocation5 [shape = 'u8[131072]{0}', space=vmem, size = 0x20000, scoped, tag = 'input window, operand 1, single buffered']
    #allocation6 [shape = 's32[1]{0}', space=sflag, size = 0x4, scoped, tag = 'scoped memory for tpu_custom_call.1']
    #allocation7 [shape = 'u8[32768]{0}', space=vmem, size = 0x8000, scoped, tag = 'input window, operand 3, single buffered']
    #allocation8 [shape = 'u8[32768]{0}', space=vmem, size = 0x8000, scoped, tag = 'input window, operand 5, single buffered']
    #allocation9 [shape = 's32[1]{0}', space=sflag, size = 0x4, scoped, tag = 'scoped memory for tpu_custom_call.1']
    #allocation10 [shape = 'u8[131072]{0}', space=vmem, size = 0x20000, scoped, tag = 'input window, operand 7, single buffered']
    #allocation11 [shape = 'u8[622592]{0}', space=vmem, size = 0x98000, scoped, tag = 'output window, operand 0']
    %14 = vsyncpa [#allocation3], 0
    %s15 = scalar_lea.sflag [#allocation3], 1
    %16 = vsyncpa %s15, 0
    %17 = vsyncpa [#allocation6], 0
    %18 = vsyncpa [#allocation9], 0
    %19 = vsyncpa [#allocation4], 0
    %s20 = scalar_lea.sflag [#allocation4], 1
    %21 = vsyncpa %s20, 0
    loop: start=0, step=1, limit=4
    $region2: #{tpu_custom_call.1} parent=1 // loop_pre_header
      _
    $region3: #{tpu_custom_call.1} parent=1 // loop_header
      %s23 = sphi 0, %s27
      %p24 = scmp.ge.s32.totalorder %s23, 4
      %s33 = sphi 0, %s35
      %s36 = sphi 0, %s33
      %s37 = sphi 0, %s36
      %s53 = sphi 0, %s37
      %s57 = sphi 0, %s57
      %s59 = sphi 0, %s57
      %s60 = sphi 0, %s59
      %s74 = sphi 0, %s60
      %s78 = sphi 0, %s78
      %s80 = sphi 0, %s78
      %s81 = sphi 0, %s80
      %s95 = sphi 0, %s81
      %s99 = sphi 0, %s99
      %s101 = sphi 0, %s99
      %s102 = sphi 0, %s101
      %s116 = sphi 0, %s102
      %s120 = sphi 0, %s120
      %s122 = sphi 0, %s120
      %s123 = sphi 0, %s122
      %s137 = sphi 0, %s123
      %s141 = sphi 0, %s141
      %s143 = sphi 0, %s141
      %s144 = sphi 0, %s143
      %s158 = sphi 0, %s144
      %s162 = sphi 0, %s162
      %s164 = sphi 0, %s162
      %s165 = sphi 0, %s164
      %s179 = sphi 0, %s165
      %s183 = sphi 0, %s183
      %s185 = sphi 0, %s183
      %s186 = sphi 0, %s185
      %s200 = sphi 0, %s186
      %s204 = sphi 0, %s204
      %s206 = sphi 0, %s204
      %s207 = sphi 0, %s206
      %s221 = sphi 0, %s207
      %s227 = sphi 0, %s229
      %s230 = sphi 0, %s227
      %s231 = sphi 0, %s230
      %s247 = sphi 0, %s231
    $region4: #{tpu_custom_call.1} parent=1 // loop_header_branch
      %26 = sbr.rel (%p24) target = $region8
    $region5: #{tpu_custom_call.1} parent=1 // loop_body
      %s28 = ssub.s32 %s23, 1
      %s29 = ssub.s32 %s23, 2
      %s30 = sadd.s32 %s23, 1
      %s31 = ssub.s32 %s23, %s30
      %p32 = scmp.eq.s32.totalorder %s31, 0
      %s34 = sadd.s32 %s33, 1
      %s35 = scalar_select %p32, %s33, %s34
      %p38 = pneg %p32
      %p39 = scmp.eq.s32.totalorder %s23, 1
      %p40 = por %p38, %p39
      %p41 = scmp.ne.s32.totalorder %s33, %s36
      %p42 = scmp.eq.s32.totalorder %s23, 0
      %p43 = por %p41, %p42
      %p44 = scmp.ne.s32.totalorder %s33, %s36
      %p45 = scmp.eq.s32.totalorder %s28, 1
      %p46 = por %p44, %p45
      %p47 = scmp.ne.s32.totalorder %s36, %s37
      %p48 = scmp.eq.s32.totalorder %s28, 0
      %p49 = por %p47, %p48
      %p50 = scmp.ne.s32.totalorder %s36, %s37
      %p51 = scmp.eq.s32.totalorder %s29, 1
      %p52 = por %p50, %p51
      %p54 = scmp.ne.s32.totalorder %s37, %s53
      %p55 = scmp.eq.s32.totalorder %s29, 0
      %p56 = por %p54, %p55
      %s58 = sadd.s32 %s57, 1
      %p61 = scmp.eq.s32.totalorder %s23, 1
      %p62 = scmp.ne.s32.totalorder %s57, %s59
      %p63 = scmp.eq.s32.totalorder %s23, 0
      %p64 = por %p62, %p63
      %p65 = scmp.ne.s32.totalorder %s57, %s59
      %p66 = scmp.eq.s32.totalorder %s28, 1
      %p67 = por %p65, %p66
      %p68 = scmp.ne.s32.totalorder %s59, %s60
      %p69 = scmp.eq.s32.totalorder %s28, 0
      %p70 = por %p68, %p69
      %p71 = scmp.ne.s32.totalorder %s59, %s60
      %p72 = scmp.eq.s32.totalorder %s29, 1
      %p73 = por %p71, %p72
      %p75 = scmp.ne.s32.totalorder %s60, %s74
      %p76 = scmp.eq.s32.totalorder %s29, 0
      %p77 = por %p75, %p76
      %s79 = sadd.s32 %s78, 1
      %p82 = scmp.eq.s32.totalorder %s23, 1
      %p83 = scmp.ne.s32.totalorder %s78, %s80
      %p84 = scmp.eq.s32.totalorder %s23, 0
      %p85 = por %p83, %p84
      %p86 = scmp.ne.s32.totalorder %s78, %s80
      %p87 = scmp.eq.s32.totalorder %s28, 1
      %p88 = por %p86, %p87
      %p89 = scmp.ne.s32.totalorder %s80, %s81
      %p90 = scmp.eq.s32.totalorder %s28, 0
      %p91 = por %p89, %p90
      %p92 = scmp.ne.s32.totalorder %s80, %s81
      %p93 = scmp.eq.s32.totalorder %s29, 1
      %p94 = por %p92, %p93
      %p96 = scmp.ne.s32.totalorder %s81, %s95
      %p97 = scmp.eq.s32.totalorder %s29, 0
      %p98 = por %p96, %p97
      %s100 = sadd.s32 %s99, 1
      %p103 = scmp.eq.s32.totalorder %s23, 1
      %p104 = scmp.ne.s32.totalorder %s99, %s101
      %p105 = scmp.eq.s32.totalorder %s23, 0
      %p106 = por %p104, %p105
      %p107 = scmp.ne.s32.totalorder %s99, %s101
      %p108 = scmp.eq.s32.totalorder %s28, 1
      %p109 = por %p107, %p108
      %p110 = scmp.ne.s32.totalorder %s101, %s102
      %p111 = scmp.eq.s32.totalorder %s28, 0
      %p112 = por %p110, %p111
      %p113 = scmp.ne.s32.totalorder %s101, %s102
      %p114 = scmp.eq.s32.totalorder %s29, 1
      %p115 = por %p113, %p114
      %p117 = scmp.ne.s32.totalorder %s102, %s116
      %p118 = scmp.eq.s32.totalorder %s29, 0
      %p119 = por %p117, %p118
      %s121 = sadd.s32 %s120, 1
      %p124 = scmp.eq.s32.totalorder %s23, 1
      %p125 = scmp.ne.s32.totalorder %s120, %s122
      %p126 = scmp.eq.s32.totalorder %s23, 0
      %p127 = por %p125, %p126
      %p128 = scmp.ne.s32.totalorder %s120, %s122
      %p129 = scmp.eq.s32.totalorder %s28, 1
      %p130 = por %p128, %p129
      %p131 = scmp.ne.s32.totalorder %s122, %s123
      %p132 = scmp.eq.s32.totalorder %s28, 0
      %p133 = por %p131, %p132
      %p134 = scmp.ne.s32.totalorder %s122, %s123
      %p135 = scmp.eq.s32.totalorder %s29, 1
      %p136 = por %p134, %p135
      %p138 = scmp.ne.s32.totalorder %s123, %s137
      %p139 = scmp.eq.s32.totalorder %s29, 0
      %p140 = por %p138, %p139
      %s142 = sadd.s32 %s141, 1
      %p145 = scmp.eq.s32.totalorder %s23, 1
      %p146 = scmp.ne.s32.totalorder %s141, %s143
      %p147 = scmp.eq.s32.totalorder %s23, 0
      %p148 = por %p146, %p147
      %p149 = scmp.ne.s32.totalorder %s141, %s143
      %p150 = scmp.eq.s32.totalorder %s28, 1
      %p151 = por %p149, %p150
      %p152 = scmp.ne.s32.totalorder %s143, %s144
      %p153 = scmp.eq.s32.totalorder %s28, 0
      %p154 = por %p152, %p153
      %p155 = scmp.ne.s32.totalorder %s143, %s144
      %p156 = scmp.eq.s32.totalorder %s29, 1
      %p157 = por %p155, %p156
      %p159 = scmp.ne.s32.totalorder %s144, %s158
      %p160 = scmp.eq.s32.totalorder %s29, 0
      %p161 = por %p159, %p160
      %s163 = sadd.s32 %s162, 1
      %p166 = scmp.eq.s32.totalorder %s23, 1
      %p167 = scmp.ne.s32.totalorder %s162, %s164
      %p168 = scmp.eq.s32.totalorder %s23, 0
      %p169 = por %p167, %p168
      %p170 = scmp.ne.s32.totalorder %s162, %s164
      %p171 = scmp.eq.s32.totalorder %s28, 1
      %p172 = por %p170, %p171
      %p173 = scmp.ne.s32.totalorder %s164, %s165
      %p174 = scmp.eq.s32.totalorder %s28, 0
      %p175 = por %p173, %p174
      %p176 = scmp.ne.s32.totalorder %s164, %s165
      %p177 = scmp.eq.s32.totalorder %s29, 1
      %p178 = por %p176, %p177
      %p180 = scmp.ne.s32.totalorder %s165, %s179
      %p181 = scmp.eq.s32.totalorder %s29, 0
      %p182 = por %p180, %p181
      %s184 = sadd.s32 %s183, 1
      %p187 = scmp.eq.s32.totalorder %s23, 1
      %p188 = scmp.ne.s32.totalorder %s183, %s185
      %p189 = scmp.eq.s32.totalorder %s23, 0
      %p190 = por %p188, %p189
      %p191 = scmp.ne.s32.totalorder %s183, %s185
      %p192 = scmp.eq.s32.totalorder %s28, 1
      %p193 = por %p191, %p192
      %p194 = scmp.ne.s32.totalorder %s185, %s186
      %p195 = scmp.eq.s32.totalorder %s28, 0
      %p196 = por %p194, %p195
      %p197 = scmp.ne.s32.totalorder %s185, %s186
      %p198 = scmp.eq.s32.totalorder %s29, 1
      %p199 = por %p197, %p198
      %p201 = scmp.ne.s32.totalorder %s186, %s200
      %p202 = scmp.eq.s32.totalorder %s29, 0
      %p203 = por %p201, %p202
      %s205 = sadd.s32 %s204, 1
      %p208 = scmp.eq.s32.totalorder %s23, 1
      %p209 = scmp.ne.s32.totalorder %s204, %s206
      %p210 = scmp.eq.s32.totalorder %s23, 0
      %p211 = por %p209, %p210
      %p212 = scmp.ne.s32.totalorder %s204, %s206
      %p213 = scmp.eq.s32.totalorder %s28, 1
      %p214 = por %p212, %p213
      %p215 = scmp.ne.s32.totalorder %s206, %s207
      %p216 = scmp.eq.s32.totalorder %s28, 0
      %p217 = por %p215, %p216
      %p218 = scmp.ne.s32.totalorder %s206, %s207
      %p219 = scmp.eq.s32.totalorder %s29, 1
      %p220 = por %p218, %p219
      %p222 = scmp.ne.s32.totalorder %s207, %s221
      %p223 = scmp.eq.s32.totalorder %s29, 0
      %p224 = por %p222, %p223
      %s225 = ssub.s32 %s23, %s30
      %p226 = scmp.eq.s32.totalorder %s225, 0
      %s228 = sadd.s32 %s227, 1
      %s229 = scalar_select %p226, %s227, %s228
      %p232 = pneg %p226
      %p233 = scmp.eq.s32.totalorder %s23, 1
      %p234 = por %p232, %p233
      %p235 = scmp.ne.s32.totalorder %s227, %s230
      %p236 = scmp.eq.s32.totalorder %s23, 0
      %p237 = por %p235, %p236
      %p238 = scmp.ne.s32.totalorder %s227, %s230
      %p239 = scmp.eq.s32.totalorder %s28, 1
      %p240 = por %p238, %p239
      %p241 = scmp.ne.s32.totalorder %s230, %s231
      %p242 = scmp.eq.s32.totalorder %s28, 0
      %p243 = por %p241, %p242
      %p244 = scmp.ne.s32.totalorder %s230, %s231
      %p245 = scmp.eq.s32.totalorder %s29, 1
      %p246 = por %p244, %p245
      %p248 = scmp.ne.s32.totalorder %s231, %s247
      %p249 = scmp.eq.s32.totalorder %s29, 0
      %p250 = por %p248, %p249
      %p251 = scmp.le.s32.totalorder 1, %s23
      %p252 = scmp.lt.s32.totalorder %s23, 3
      %p253 = pnand %p251, %p252
      %p254 = pneg %p253
      // Predicated region
      $region9: #{tpu_custom_call.1} parent=5 // pred_check
        _
      $region10: #{tpu_custom_call.1} parent=5 // pred_check_branch
        %256 = sbr.rel (%p253) target = $region12
      $region11: #{tpu_custom_call.1} parent=5 // pred_region
        %s257 = ssub.s32 %s23, 1
        // Predicated region
        $region13: #{tpu_custom_call.1} parent=11 // pred_check
          %p258 = pneg %p70
        $region14: #{tpu_custom_call.1} parent=11 // pred_check_branch
          %260 = sbr.rel (%p258) target = $region16
        $region15: #{tpu_custom_call.1} parent=11 // pred_region
          %s262 = ssub.s32 4096, 4096
          %263 = vsyncadd [#allocation6], %s262
          %s264 = sshll.u32 [#allocation5], 4
          %s265 = int_to_ptr.vmem [resolvable:$true] %s264
          %270 = dma.hbm_to_vmem [thread:$0]  %s1, 4096, %s265, [#allocation6], 64, 64, 4
        $region16: #{tpu_custom_call.1} parent=11 // pred_fallthru
          _
        // Predicated region
        $region17: #{tpu_custom_call.1} parent=11 // pred_check
          %p271 = pneg %p91
        $region18: #{tpu_custom_call.1} parent=11 // pred_check_branch
          %273 = sbr.rel (%p271) target = $region20
        $region19: #{tpu_custom_call.1} parent=11 // pred_region
          _
        $region20: #{tpu_custom_call.1} parent=11 // pred_fallthru
          _
        // Predicated region
        $region21: #{tpu_custom_call.1} parent=11 // pred_check
          %p274 = pneg %p112
        $region22: #{tpu_custom_call.1} parent=11 // pred_check_branch
          %276 = sbr.rel (%p274) target = $region24
        $region23: #{tpu_custom_call.1} parent=11 // pred_region
          %s278 = ssub.s32 1024, 1024
          %279 = vsyncadd [#allocation6], %s278
          %s280 = sshll.u32 [#allocation7], 4
          %s281 = int_to_ptr.vmem [resolvable:$true] %s280
          %286 = dma.hbm_to_vmem [thread:$0]  %s3, 1024, %s281, [#allocation6], 64, 64, 4
        $region24: #{tpu_custom_call.1} parent=11 // pred_fallthru
          _
        // Predicated region
        $region25: #{tpu_custom_call.1} parent=11 // pred_check
          %p287 = pneg %p133
        $region26: #{tpu_custom_call.1} parent=11 // pred_check_branch
          %289 = sbr.rel (%p287) target = $region28
        $region27: #{tpu_custom_call.1} parent=11 // pred_region
          _
        $region28: #{tpu_custom_call.1} parent=11 // pred_fallthru
          _
        // Predicated region
        $region29: #{tpu_custom_call.1} parent=11 // pred_check
          %p290 = pneg %p154
        $region30: #{tpu_custom_call.1} parent=11 // pred_check_branch
          %292 = sbr.rel (%p290) target = $region32
        $region31: #{tpu_custom_call.1} parent=11 // pred_region
          %s294 = ssub.s32 1024, 1024
          %295 = vsyncadd [#allocation9], %s294
          %s296 = sshll.u32 [#allocation8], 4
          %s297 = int_to_ptr.vmem [resolvable:$true] %s296
          %302 = dma.hbm_to_vmem [thread:$0]  %s5, 1024, %s297, [#allocation9], 64, 64, 4
        $region32: #{tpu_custom_call.1} parent=11 // pred_fallthru
          _
        // Predicated region
        $region33: #{tpu_custom_call.1} parent=11 // pred_check
          %p303 = pneg %p175
        $region34: #{tpu_custom_call.1} parent=11 // pred_check_branch
          %305 = sbr.rel (%p303) target = $region36
        $region35: #{tpu_custom_call.1} parent=11 // pred_region
          _
        $region36: #{tpu_custom_call.1} parent=11 // pred_fallthru
          _
        // Predicated region
        $region37: #{tpu_custom_call.1} parent=11 // pred_check
          %p306 = pneg %p196
        $region38: #{tpu_custom_call.1} parent=11 // pred_check_branch
          %308 = sbr.rel (%p306) target = $region40
        $region39: #{tpu_custom_call.1} parent=11 // pred_region
          %s310 = ssub.s32 4096, 4096
          %311 = vsyncadd [#allocation9], %s310
          %s312 = sshll.u32 [#allocation10], 4
          %s313 = int_to_ptr.vmem [resolvable:$true] %s312
          %318 = dma.hbm_to_vmem [thread:$0]  %s7, 4096, %s313, [#allocation9], 256, 256, 16
        $region40: #{tpu_custom_call.1} parent=11 // pred_fallthru
          _
        // Predicated region
        $region41: #{tpu_custom_call.1} parent=11 // pred_check
          %p319 = pneg %p217
        $region42: #{tpu_custom_call.1} parent=11 // pred_check_branch
          %321 = sbr.rel (%p319) target = $region44
        $region43: #{tpu_custom_call.1} parent=11 // pred_region
          _
        $region44: #{tpu_custom_call.1} parent=11 // pred_fallthru
          _
      $region12: #{tpu_custom_call.1} parent=5 // pred_fallthru
        _
      %p322 = scmp.lt.s32.totalorder %s23, 2
      // Predicated region
      $region45: #{tpu_custom_call.1} parent=5 // pred_check
        %p323 = pneg %p322
      $region46: #{tpu_custom_call.1} parent=5 // pred_check_branch
        %325 = sbr.rel (%p323) target = $region48
      $region47: #{tpu_custom_call.1} parent=5 // pred_region
        // Predicated region
        $region49: #{tpu_custom_call.1} parent=47 // pred_check
          %p326 = pneg %p43
        $region50: #{tpu_custom_call.1} parent=47 // pred_check_branch
          %328 = sbr.rel (%p326) target = $region52
        $region51: #{tpu_custom_call.1} parent=47 // pred_region
          %s329 = sand.u32 %s33, 1
          %s330 = scalar_lea.sflag [#allocation3], %s329
          %s331 = sand.u32 %s33, 1
          %s332 = smul.addr %s331, 608
          %s333 = scalar_lea.vmem [#allocation2], %s332
          %s334 = smul.u32 19, %s23
          %s336 = ssub.s32 9728, 9728
          %337 = vsyncadd %s330, %s336
          %s338 = smul.addr %s334, 4
          %s339 = smul.addr %s338, 128
          %s340 = scalar_lea.hbm %s0, %s339
          %s341 = sshll.u32 %s333, 4
          %s342 = int_to_ptr.vmem [resolvable:$true] %s341
          %347 = dma.hbm_to_vmem [thread:$0]  %s340, 9728, %s342, %s330, 512, 512, 32
        $region52: #{tpu_custom_call.1} parent=47 // pred_fallthru
          _
      $region48: #{tpu_custom_call.1} parent=5 // pred_fallthru
        _
      %p348 = scmp.le.s32.totalorder 1, %s23
      %p349 = scmp.lt.s32.totalorder %s23, 3
      %p350 = pnand %p348, %p349
      %p351 = pneg %p350
      // Predicated region
      $region53: #{tpu_custom_call.1} parent=5 // pred_check
        _
      $region54: #{tpu_custom_call.1} parent=5 // pred_check_branch
        %353 = sbr.rel (%p350) target = $region56
      $region55: #{tpu_custom_call.1} parent=5 // pred_region
        %s354 = ssub.s32 %s23, 1
        %s355 = sand.u32 %s36, 1
        %s356 = scalar_lea.sflag [#allocation3], %s355
        %s357 = sand.u32 %s36, 1
        %s358 = smul.addr %s357, 608
        %s359 = scalar_lea.vmem [#allocation2], %s358
        // Predicated region
        $region57: #{tpu_custom_call.1} parent=55 // pred_check
          %p360 = pneg %p49
        $region58: #{tpu_custom_call.1} parent=55 // pred_check_branch
          %362 = sbr.rel (%p360) target = $region60
        $region59: #{tpu_custom_call.1} parent=55 // pred_region
          %363 = dma.done %s356, 9728
        $region60: #{tpu_custom_call.1} parent=55 // pred_fallthru
          _
        // Predicated region
        $region61: #{tpu_custom_call.1} parent=55 // pred_check
          %p364 = pneg %p70
        $region62: #{tpu_custom_call.1} parent=55 // pred_check_branch
          %366 = sbr.rel (%p364) target = $region64
        $region63: #{tpu_custom_call.1} parent=55 // pred_region
          %367 = dma.done [#allocation6], 4096
        $region64: #{tpu_custom_call.1} parent=55 // pred_fallthru
          _
        // Predicated region
        $region65: #{tpu_custom_call.1} parent=55 // pred_check
          %p368 = pneg %p112
        $region66: #{tpu_custom_call.1} parent=55 // pred_check_branch
          %370 = sbr.rel (%p368) target = $region68
        $region67: #{tpu_custom_call.1} parent=55 // pred_region
          %371 = dma.done [#allocation6], 1024
        $region68: #{tpu_custom_call.1} parent=55 // pred_fallthru
          _
        // Predicated region
        $region69: #{tpu_custom_call.1} parent=55 // pred_check
          %p372 = pneg %p154
        $region70: #{tpu_custom_call.1} parent=55 // pred_check_branch
          %374 = sbr.rel (%p372) target = $region72
        $region71: #{tpu_custom_call.1} parent=55 // pred_region
          %375 = dma.done [#allocation9], 1024
        $region72: #{tpu_custom_call.1} parent=55 // pred_fallthru
          _
        // Predicated region
        $region73: #{tpu_custom_call.1} parent=55 // pred_check
          %p376 = pneg %p196
        $region74: #{tpu_custom_call.1} parent=55 // pred_check_branch
          %378 = sbr.rel (%p376) target = $region76
        $region75: #{tpu_custom_call.1} parent=55 // pred_region
          %379 = dma.done [#allocation9], 4096
        $region76: #{tpu_custom_call.1} parent=55 // pred_fallthru
          _
        %s380 = sand.u32 %s36, 1
        %s381 = scalar_lea.sflag [#allocation3], %s380
        %s382 = sand.u32 %s36, 1
        %s383 = smul.addr %s382, 608
        %s384 = scalar_lea.vmem [#allocation2], %s383
        %p385 = pneg %p49
        %p386 = pneg %p46
        %p387 = pneg %p70
        %p388 = pneg %p67
        %p389 = pneg %p91
        %p390 = pneg %p88
        %p391 = pneg %p112
        %p392 = pneg %p109
        %p393 = pneg %p133
        %p394 = pneg %p130
        %p395 = pneg %p154
        %p396 = pneg %p151
        %p397 = pneg %p175
        %p398 = pneg %p172
        %p399 = pneg %p196
        %p400 = pneg %p193
        %p401 = pneg %p217
        %p402 = pneg %p214
        %p403 = pneg %p243
        %p404 = pneg %p240
        %s405 = sand.u32 %s230, 1
        %s406 = scalar_lea.sflag [#allocation4], %s405
        %s407 = sand.u32 %s230, 1
        %s408 = smul.addr %s407, 608
        %s409 = scalar_lea.vmem [#allocation11], %s408
        %s410 = smul.u32 19, %s28
        %s411 = smul.u32 19, %s28
        %v413 = vld [vmem:[%s359] sm:$0xff]
        %v414 = vld [vmem:[%s359 + $0x8] sm:$0xff]
        %v415 = vld [vmem:[%s359 + $0x10] sm:$0xff]
        %v416 = vld [vmem:[%s359 + $0x18] sm:$0xff]
        %v417 = vld [vmem:[%s359 + $0x20] sm:$0xff]
        %v418 = vld [vmem:[%s359 + $0x28] sm:$0xff]
        %v419 = vld [vmem:[%s359 + $0x30] sm:$0xff]
        %v420 = vld [vmem:[%s359 + $0x38] sm:$0xff]
        %v421 = vld [vmem:[%s359 + $0x40] sm:$0xff]
        %v422 = vld [vmem:[%s359 + $0x48] sm:$0xff]
        %v423 = vld [vmem:[%s359 + $0x50] sm:$0xff]
        %v424 = vld [vmem:[%s359 + $0x58] sm:$0xff]
        %v425 = vld [vmem:[%s359 + $0x60] sm:$0xff]
        %v426 = vld [vmem:[%s359 + $0x68] sm:$0xff]
        %v427 = vld [vmem:[%s359 + $0x70] sm:$0xff]
        %v428 = vld [vmem:[%s359 + $0x78] sm:$0xff]
        %v429 = vld [vmem:[%s359 + $0x80] sm:$0xff]
        %v430 = vld [vmem:[%s359 + $0x88] sm:$0xff]
        %v431 = vld [vmem:[%s359 + $0x90] sm:$0xff]
        %v432 = vld [vmem:[%s359 + $0x98] sm:$0xff]
        %v433 = vld [vmem:[%s359 + $0xa0] sm:$0xff]
        %v434 = vld [vmem:[%s359 + $0xa8] sm:$0xff]
        %v435 = vld [vmem:[%s359 + $0xb0] sm:$0xff]
        %v436 = vld [vmem:[%s359 + $0xb8] sm:$0xff]
        %v437 = vld [vmem:[%s359 + $0xc0] sm:$0xff]
        %v438 = vld [vmem:[%s359 + $0xc8] sm:$0xff]
        %v439 = vld [vmem:[%s359 + $0xd0] sm:$0xff]
        %v440 = vld [vmem:[%s359 + $0xd8] sm:$0xff]
        %v441 = vld [vmem:[%s359 + $0xe0] sm:$0xff]
        %v442 = vld [vmem:[%s359 + $0xe8] sm:$0xff]
        %v443 = vld [vmem:[%s359 + $0xf0] sm:$0xff]
        %v444 = vld [vmem:[%s359 + $0xf8] sm:$0xff]
        %v445 = vld [vmem:[%s359 + $0x100] sm:$0xff]
        %v446 = vld [vmem:[%s359 + $0x108] sm:$0xff]
        %v447 = vld [vmem:[%s359 + $0x110] sm:$0xff]
        %v448 = vld [vmem:[%s359 + $0x118] sm:$0xff]
        %v449 = vld [vmem:[%s359 + $0x120] sm:$0xff]
        %v450 = vld [vmem:[%s359 + $0x128] sm:$0xff]
        %v451 = vld [vmem:[%s359 + $0x130] sm:$0xff]
        %v452 = vld [vmem:[%s359 + $0x138] sm:$0xff]
        %v453 = vld [vmem:[%s359 + $0x140] sm:$0xff]
        %v454 = vld [vmem:[%s359 + $0x148] sm:$0xff]
        %v455 = vld [vmem:[%s359 + $0x150] sm:$0xff]
        %v456 = vld [vmem:[%s359 + $0x158] sm:$0xff]
        %v457 = vld [vmem:[%s359 + $0x160] sm:$0xff]
        %v458 = vld [vmem:[%s359 + $0x168] sm:$0xff]
        %v459 = vld [vmem:[%s359 + $0x170] sm:$0xff]
        %v460 = vld [vmem:[%s359 + $0x178] sm:$0xff]
        %v461 = vld [vmem:[%s359 + $0x180] sm:$0xff]
        %v462 = vld [vmem:[%s359 + $0x188] sm:$0xff]
        %v463 = vld [vmem:[%s359 + $0x190] sm:$0xff]
        %v464 = vld [vmem:[%s359 + $0x198] sm:$0xff]
        %v465 = vld [vmem:[%s359 + $0x1a0] sm:$0xff]
        %v466 = vld [vmem:[%s359 + $0x1a8] sm:$0xff]
        %v467 = vld [vmem:[%s359 + $0x1b0] sm:$0xff]
        %v468 = vld [vmem:[%s359 + $0x1b8] sm:$0xff]
        %v469 = vld [vmem:[%s359 + $0x1c0] sm:$0xff]
        %v470 = vld [vmem:[%s359 + $0x1c8] sm:$0xff]
        %v471 = vld [vmem:[%s359 + $0x1d0] sm:$0xff]
        %v472 = vld [vmem:[%s359 + $0x1d8] sm:$0xff]
        %v473 = vld [vmem:[%s359 + $0x1e0] sm:$0xff]
        %v474 = vld [vmem:[%s359 + $0x1e8] sm:$0xff]
        %v475 = vld [vmem:[%s359 + $0x1f0] sm:$0xff]
        %v476 = vld [vmem:[%s359 + $0x1f8] sm:$0xff]
        %v477 = vld [vmem:[%s359 + $0x200] sm:$0xff]
        %v478 = vld [vmem:[%s359 + $0x208] sm:$0xff]
        %v479 = vld [vmem:[%s359 + $0x210] sm:$0xff]
        %v480 = vld [vmem:[%s359 + $0x218] sm:$0xff]
        %v481 = vld [vmem:[%s359 + $0x220] sm:$0xff]
        %v482 = vld [vmem:[%s359 + $0x228] sm:$0xff]
        %v483 = vld [vmem:[%s359 + $0x230] sm:$0xff]
        %v484 = vld [vmem:[%s359 + $0x238] sm:$0xff]
        %v485 = vld [vmem:[%s359 + $0x240] sm:$0xff]
        %v486 = vld [vmem:[%s359 + $0x248] sm:$0xff]
        %v487 = vld [vmem:[%s359 + $0x250] sm:$0xff]
        %v488 = vld [vmem:[%s359 + $0x258] sm:$0xff]
        %v489 = vpack.c.bf16 %v417, %v413
        %v490 = vpack.c.bf16 %v418, %v414
        %v491 = vpack.c.bf16 %v419, %v415
        %v492 = vpack.c.bf16 %v420, %v416
        %v493 = vpack.c.bf16 %v425, %v421
        %v494 = vpack.c.bf16 %v426, %v422
        %v495 = vpack.c.bf16 %v427, %v423
        %v496 = vpack.c.bf16 %v428, %v424
        %v497 = vpack.c.bf16 %v433, %v429
        %v498 = vpack.c.bf16 %v434, %v430
        %v499 = vpack.c.bf16 %v435, %v431
        %v500 = vpack.c.bf16 %v436, %v432
        %v501 = vpack.c.bf16 %v441, %v437
        %v502 = vpack.c.bf16 %v442, %v438
        %v503 = vpack.c.bf16 %v443, %v439
        %v504 = vpack.c.bf16 %v444, %v440
        %v505 = vpack.c.bf16 %v449, %v445
        %v506 = vpack.c.bf16 %v450, %v446
        %v507 = vpack.c.bf16 %v451, %v447
        %v508 = vpack.c.bf16 %v452, %v448
        %v509 = vpack.c.bf16 %v457, %v453
        %v510 = vpack.c.bf16 %v458, %v454
        %v511 = vpack.c.bf16 %v459, %v455
        %v512 = vpack.c.bf16 %v460, %v456
        %v513 = vpack.c.bf16 %v465, %v461
        %v514 = vpack.c.bf16 %v466, %v462
        %v515 = vpack.c.bf16 %v467, %v463
        %v516 = vpack.c.bf16 %v468, %v464
        %v517 = vpack.c.bf16 %v473, %v469
        %v518 = vpack.c.bf16 %v474, %v470
        %v519 = vpack.c.bf16 %v475, %v471
        %v520 = vpack.c.bf16 %v476, %v472
        %v521 = vpack.c.bf16 %v481, %v477
        %v522 = vpack.c.bf16 %v482, %v478
        %v523 = vpack.c.bf16 %v483, %v479
        %v524 = vpack.c.bf16 %v484, %v480
        %v525 = vpack.c.bf16 %v485, %v485
        %v526 = vpack.c.bf16 %v486, %v486
        %v527 = vpack.c.bf16 %v487, %v487
        %v528 = vpack.c.bf16 %v488, %v488
        %v529 = vld [vmem:[#allocation5] sm:$0xf]
        %v530 = vld [vmem:[#allocation5 + $0x4] sm:$0xf]
        %v531 = vld [vmem:[#allocation5 + $0x8] sm:$0xf]
        %v532 = vld [vmem:[#allocation5 + $0xc] sm:$0xf]
        %v533 = vld [vmem:[#allocation5 + $0x10] sm:$0xf]
        %v534 = vld [vmem:[#allocation5 + $0x14] sm:$0xf]
        %v535 = vld [vmem:[#allocation5 + $0x18] sm:$0xf]
        %v536 = vld [vmem:[#allocation5 + $0x1c] sm:$0xf]
        %v537 = vld [vmem:[#allocation5 + $0x20] sm:$0xf]
        %v538 = vld [vmem:[#allocation5 + $0x24] sm:$0xf]
        %v539 = vld [vmem:[#allocation5 + $0x28] sm:$0xf]
        %v540 = vld [vmem:[#allocation5 + $0x2c] sm:$0xf]
        %v541 = vld [vmem:[#allocation5 + $0x30] sm:$0xf]
        %v542 = vld [vmem:[#allocation5 + $0x34] sm:$0xf]
        %v543 = vld [vmem:[#allocation5 + $0x38] sm:$0xf]
        %v544 = vld [vmem:[#allocation5 + $0x3c] sm:$0xf]
        %v545 = vld [vmem:[#allocation5 + $0x40] sm:$0xf]
        %v546 = vld [vmem:[#allocation5 + $0x44] sm:$0xf]
        %v547 = vld [vmem:[#allocation5 + $0x48] sm:$0xf]
        %v548 = vld [vmem:[#allocation5 + $0x4c] sm:$0xf]
        %v549 = vld [vmem:[#allocation5 + $0x50] sm:$0xf]
        %v550 = vld [vmem:[#allocation5 + $0x54] sm:$0xf]
        %v551 = vld [vmem:[#allocation5 + $0x58] sm:$0xf]
        %v552 = vld [vmem:[#allocation5 + $0x5c] sm:$0xf]
        %v553 = vld [vmem:[#allocation5 + $0x60] sm:$0xf]
        %v554 = vld [vmem:[#allocation5 + $0x64] sm:$0xf]
        %v555 = vld [vmem:[#allocation5 + $0x68] sm:$0xf]
        %v556 = vld [vmem:[#allocation5 + $0x6c] sm:$0xf]
        %v557 = vld [vmem:[#allocation5 + $0x70] sm:$0xf]
        %v558 = vld [vmem:[#allocation5 + $0x74] sm:$0xf]
        %v559 = vld [vmem:[#allocation5 + $0x78] sm:$0xf]
        %v560 = vld [vmem:[#allocation5 + $0x7c] sm:$0xf]
        %v561 = vld [vmem:[#allocation5 + $0x80] sm:$0xf]
        %v562 = vld [vmem:[#allocation5 + $0x84] sm:$0xf]
        %v563 = vld [vmem:[#allocation5 + $0x88] sm:$0xf]
        %v564 = vld [vmem:[#allocation5 + $0x8c] sm:$0xf]
        %v565 = vld [vmem:[#allocation5 + $0x90] sm:$0xf]
        %v566 = vld [vmem:[#allocation5 + $0x94] sm:$0xf]
        %v567 = vld [vmem:[#allocation5 + $0x98] sm:$0xf]
        %v568 = vld [vmem:[#allocation5 + $0x9c] sm:$0xf]
        %v569 = vld [vmem:[#allocation5 + $0xa0] sm:$0xf]
        %v570 = vld [vmem:[#allocation5 + $0xa4] sm:$0xf]
        %v571 = vld [vmem:[#allocation5 + $0xa8] sm:$0xf]
        %v572 = vld [vmem:[#allocation5 + $0xac] sm:$0xf]
        %v573 = vld [vmem:[#allocation5 + $0xb0] sm:$0xf]
        %v574 = vld [vmem:[#allocation5 + $0xb4] sm:$0xf]
        %v575 = vld [vmem:[#allocation5 + $0xb8] sm:$0xf]
        %v576 = vld [vmem:[#allocation5 + $0xbc] sm:$0xf]
        %v577 = vld [vmem:[#allocation5 + $0xc0] sm:$0xf]
        %v578 = vld [vmem:[#allocation5 + $0xc4] sm:$0xf]
        %v579 = vld [vmem:[#allocation5 + $0xc8] sm:$0xf]
        %v580 = vld [vmem:[#allocation5 + $0xcc] sm:$0xf]
        %v581 = vld [vmem:[#allocation5 + $0xd0] sm:$0xf]
        %v582 = vld [vmem:[#allocation5 + $0xd4] sm:$0xf]
        %v583 = vld [vmem:[#allocation5 + $0xd8] sm:$0xf]
        %v584 = vld [vmem:[#allocation5 + $0xdc] sm:$0xf]
        %v585 = vld [vmem:[#allocation5 + $0xe0] sm:$0xf]
        %v586 = vld [vmem:[#allocation5 + $0xe4] sm:$0xf]
        %v587 = vld [vmem:[#allocation5 + $0xe8] sm:$0xf]
        %v588 = vld [vmem:[#allocation5 + $0xec] sm:$0xf]
        %v589 = vld [vmem:[#allocation5 + $0xf0] sm:$0xf]
        %v590 = vld [vmem:[#allocation5 + $0xf4] sm:$0xf]
        %v591 = vld [vmem:[#allocation5 + $0xf8] sm:$0xf]
        %v592 = vld [vmem:[#allocation5 + $0xfc] sm:$0xf]
        %v593 = vld [vmem:[%s2] sm:$0x1]
        %v595 = vlaneseq
        %v596 = vshrl.u32 %v595, 7
        %v597 = vsub.s32 0, %v596
        %v598 = vrot.slane %v593, %v597
        %v664 = vunpack.c.l.b16 %v529
        %v665 = vunpack.c.l.b16 %v530
        %v666 = vunpack.c.l.b16 %v531
        %v667 = vunpack.c.l.b16 %v532
        %v668 = vunpack.c.l.b16 %v533
        %v669 = vunpack.c.l.b16 %v534
        %v670 = vunpack.c.l.b16 %v535
        %v671 = vunpack.c.l.b16 %v536
        %v672 = vunpack.c.l.b16 %v537
        %v673 = vunpack.c.l.b16 %v538
        %v674 = vunpack.c.l.b16 %v539
        %v675 = vunpack.c.l.b16 %v540
        %v676 = vunpack.c.l.b16 %v541
        %v677 = vunpack.c.l.b16 %v542
        %v678 = vunpack.c.l.b16 %v543
        %v679 = vunpack.c.l.b16 %v544
        %v680 = vunpack.c.l.b16 %v545
        %v681 = vunpack.c.l.b16 %v546
        %v682 = vunpack.c.l.b16 %v547
        %v683 = vunpack.c.l.b16 %v548
        %v684 = vunpack.c.l.b16 %v549
        %v685 = vunpack.c.l.b16 %v550
        %v686 = vunpack.c.l.b16 %v551
        %v687 = vunpack.c.l.b16 %v552
        %v688 = vunpack.c.l.b16 %v553
        %v689 = vunpack.c.l.b16 %v554
        %v690 = vunpack.c.l.b16 %v555
        %v691 = vunpack.c.l.b16 %v556
        %v692 = vunpack.c.l.b16 %v557
        %v693 = vunpack.c.l.b16 %v558
        %v694 = vunpack.c.l.b16 %v559
        %v695 = vunpack.c.l.b16 %v560
        %v696 = vunpack.c.l.b16 %v561
        %v697 = vunpack.c.l.b16 %v562
        %v698 = vunpack.c.l.b16 %v563
        %v699 = vunpack.c.l.b16 %v564
        %v700 = vunpack.c.l.b16 %v565
        %v701 = vunpack.c.l.b16 %v566
        %v702 = vunpack.c.l.b16 %v567
        %v703 = vunpack.c.l.b16 %v568
        %v704 = vunpack.c.l.b16 %v569
        %v705 = vunpack.c.l.b16 %v570
        %v706 = vunpack.c.l.b16 %v571
        %v707 = vunpack.c.l.b16 %v572
        %v708 = vunpack.c.l.b16 %v573
        %v709 = vunpack.c.l.b16 %v574
        %v710 = vunpack.c.l.b16 %v575
        %v711 = vunpack.c.l.b16 %v576
        %v712 = vunpack.c.l.b16 %v577
        %v713 = vunpack.c.l.b16 %v578
        %v714 = vunpack.c.l.b16 %v579
        %v715 = vunpack.c.l.b16 %v580
        %v716 = vunpack.c.l.b16 %v581
        %v717 = vunpack.c.l.b16 %v582
        %v718 = vunpack.c.l.b16 %v583
        %v719 = vunpack.c.l.b16 %v584
        %v720 = vunpack.c.l.b16 %v585
        %v721 = vunpack.c.l.b16 %v586
        %v722 = vunpack.c.l.b16 %v587
        %v723 = vunpack.c.l.b16 %v588
        %v724 = vunpack.c.l.b16 %v589
        %v725 = vunpack.c.l.b16 %v590
        %v726 = vunpack.c.l.b16 %v591
        %v727 = vunpack.c.l.b16 %v592
        %v728 = vpack.c.b16 %v665, %v664
        %v729 = vpack.c.b16 %v667, %v666
        %v730 = vpack.c.b16 %v669, %v668
        %v731 = vpack.c.b16 %v671, %v670
        %v732 = vpack.c.b16 %v673, %v672
        %v733 = vpack.c.b16 %v675, %v674
        %v734 = vpack.c.b16 %v677, %v676
        %v735 = vpack.c.b16 %v679, %v678
        %v736 = vpack.c.b16 %v681, %v680
        %v737 = vpack.c.b16 %v683, %v682
        %v738 = vpack.c.b16 %v685, %v684
        %v739 = vpack.c.b16 %v687, %v686
        %v740 = vpack.c.b16 %v689, %v688
        %v741 = vpack.c.b16 %v691, %v690
        %v742 = vpack.c.b16 %v693, %v692
        %v743 = vpack.c.b16 %v695, %v694
        %v744 = vpack.c.b16 %v697, %v696
        %v745 = vpack.c.b16 %v699, %v698
        %v746 = vpack.c.b16 %v701, %v700
        %v747 = vpack.c.b16 %v703, %v702
        %v748 = vpack.c.b16 %v705, %v704
        %v749 = vpack.c.b16 %v707, %v706
        %v750 = vpack.c.b16 %v709, %v708
        %v751 = vpack.c.b16 %v711, %v710
        %v752 = vpack.c.b16 %v713, %v712
        %v753 = vpack.c.b16 %v715, %v714
        %v754 = vpack.c.b16 %v717, %v716
        %v755 = vpack.c.b16 %v719, %v718
        %v756 = vpack.c.b16 %v721, %v720
        %v757 = vpack.c.b16 %v723, %v722
        %v758 = vpack.c.b16 %v725, %v724
        %v759 = vpack.c.b16 %v727, %v726
        %792 = vmatprep.subr.bf16.mxu0 0
        %793 = vmatpush1.bf16.msra.mxu0 %v735
        %794 = vmatprep.subr.bf16.mxu0 0
        %795 = vmatpush1.bf16.msra.mxu0 %v734
        %796 = vmatprep.subr.bf16.mxu0 0
        %797 = vmatpush1.bf16.msra.mxu0 %v733
        %798 = vmatprep.subr.bf16.mxu0 0
        %799 = vmatpush1.bf16.msra.mxu0 %v732
        %800 = vmatprep.subr.bf16.mxu0 0
        %801 = vmatpush1.bf16.msra.mxu0 %v731
        %802 = vmatprep.subr.bf16.mxu0 0
        %803 = vmatpush1.bf16.msra.mxu0 %v730
        %804 = vmatprep.subr.bf16.mxu0 0
        %805 = vmatpush1.bf16.msra.mxu0 %v729
        %806 = vmatprep.subr.bf16.mxu0 0
        %807 = vmatpush1.bf16.msra.mxu0 %v728
        %808 = vmatprep.subr.bf16.mxu0 0
        %809 = vmatpush2.bf16.msra.mxu0 %v743
        %810 = vmatprep.subr.bf16.mxu0 0
        %811 = vmatpush2.bf16.msra.mxu0 %v742
        %812 = vmatprep.subr.bf16.mxu0 0
        %813 = vmatpush2.bf16.msra.mxu0 %v741
        %814 = vmatprep.subr.bf16.mxu0 0
        %815 = vmatpush2.bf16.msra.mxu0 %v740
        %816 = vmatprep.subr.bf16.mxu0 0
        %817 = vmatpush2.bf16.msra.mxu0 %v739
        %818 = vmatprep.subr.bf16.mxu0 0
        %819 = vmatpush2.bf16.msra.mxu0 %v738
        %820 = vmatprep.subr.bf16.mxu0 0
        %821 = vmatpush2.bf16.msra.mxu0 %v737
        %822 = vmatprep.subr.bf16.mxu0 0
        %823 = vmatpush2.bf16.msra.mxu0 %v736
        %824 = vmatprep.mubr.bf16.mxu0 %v490
        %825 = vmatmul.mubr.bf16.gmra.mxu0 %v489
        %v826 = vpop.f32.mrf.mxu0
        %v827 = vadd.f32 %v598, %v826
        %v828 = vpop.f32.mrf.mxu0
        %v829 = vpop.f32.mrf.mxu0
        %v830 = vadd.f32 %v598, %v829
        %v831 = vpop.f32.mrf.mxu0
        %832 = vmatprep.mubr.bf16.mxu0 %v494
        %833 = vmatmul.mubr.bf16.gmra.mxu0 %v493
        %v834 = vpop.f32.mrf.mxu0
        %v835 = vadd.f32 %v598, %v834
        %v836 = vpop.f32.mrf.mxu0
        %v837 = vpop.f32.mrf.mxu0
        %v838 = vadd.f32 %v598, %v837
        %v839 = vpop.f32.mrf.mxu0
        %840 = vmatprep.mubr.bf16.mxu0 %v498
        %841 = vmatmul.mubr.bf16.gmra.mxu0 %v497
        %v842 = vpop.f32.mrf.mxu0
        %v843 = vadd.f32 %v598, %v842
        %v844 = vpop.f32.mrf.mxu0
        %v845 = vpop.f32.mrf.mxu0
        %v846 = vadd.f32 %v598, %v845
        %v847 = vpop.f32.mrf.mxu0
        %848 = vmatprep.mubr.bf16.mxu0 %v502
        %849 = vmatmul.mubr.bf16.gmra.mxu0 %v501
        %v850 = vpop.f32.mrf.mxu0
        %v851 = vadd.f32 %v598, %v850
        %v852 = vpop.f32.mrf.mxu0
        %v853 = vpop.f32.mrf.mxu0
        %v854 = vadd.f32 %v598, %v853
        %v855 = vpop.f32.mrf.mxu0
        %856 = vmatprep.mubr.bf16.mxu0 %v506
        %857 = vmatmul.mubr.bf16.gmra.mxu0 %v505
        %v858 = vpop.f32.mrf.mxu0
        %v859 = vadd.f32 %v598, %v858
        %v860 = vpop.f32.mrf.mxu0
        %v861 = vpop.f32.mrf.mxu0
        %v862 = vadd.f32 %v598, %v861
        %v863 = vpop.f32.mrf.mxu0
        %864 = vmatprep.mubr.bf16.mxu0 %v510
        %865 = vmatmul.mubr.bf16.gmra.mxu0 %v509
        %v866 = vpop.f32.mrf.mxu0
        %v867 = vadd.f32 %v598, %v866
        %v868 = vpop.f32.mrf.mxu0
        %v869 = vpop.f32.mrf.mxu0
        %v870 = vadd.f32 %v598, %v869
        %v871 = vpop.f32.mrf.mxu0
        %872 = vmatprep.mubr.bf16.mxu0 %v514
        %873 = vmatmul.mubr.bf16.gmra.mxu0 %v513
        %v874 = vpop.f32.mrf.mxu0
        %v875 = vadd.f32 %v598, %v874
        %v876 = vpop.f32.mrf.mxu0
        %v877 = vpop.f32.mrf.mxu0
        %v878 = vadd.f32 %v598, %v877
        %v879 = vpop.f32.mrf.mxu0
        %880 = vmatprep.mubr.bf16.mxu0 %v518
        %881 = vmatmul.mubr.bf16.gmra.mxu0 %v517
        %v882 = vpop.f32.mrf.mxu0
        %v883 = vadd.f32 %v598, %v882
        %v884 = vpop.f32.mrf.mxu0
        %v885 = vpop.f32.mrf.mxu0
        %v886 = vadd.f32 %v598, %v885
        %v887 = vpop.f32.mrf.mxu0
        %888 = vmatprep.mubr.bf16.mxu0 %v522
        %889 = vmatmul.mubr.bf16.gmra.mxu0 %v521
        %v890 = vpop.f32.mrf.mxu0
        %v891 = vadd.f32 %v598, %v890
        %v892 = vpop.f32.mrf.mxu0
        %v893 = vpop.f32.mrf.mxu0
        %v894 = vadd.f32 %v598, %v893
        %v895 = vpop.f32.mrf.mxu0
        %896 = vmatprep.mubr.bf16.mxu0 %v526
        %897 = vmatmul.mubr.bf16.gmra.mxu0 %v525
        %v898 = vpop.f32.mrf.mxu0
        %v899 = vadd.f32 %v598, %v898
        %v900 = vpop.f32.mrf.mxu0
        %v901 = vpop.f32.mrf.mxu0
        %v902 = vpop.f32.mrf.mxu0
        %903 = vdwg.mxu0
        %904 = vmatprep.subr.bf16.mxu0 0
        %905 = vmatpush1.bf16.msra.mxu0 %v751
        %906 = vmatprep.subr.bf16.mxu0 0
        %907 = vmatpush1.bf16.msra.mxu0 %v750
        %908 = vmatprep.subr.bf16.mxu0 0
        %909 = vmatpush1.bf16.msra.mxu0 %v749
        %910 = vmatprep.subr.bf16.mxu0 0
        %911 = vmatpush1.bf16.msra.mxu0 %v748
        %912 = vmatprep.subr.bf16.mxu0 0
        %913 = vmatpush1.bf16.msra.mxu0 %v747
        %914 = vmatprep.subr.bf16.mxu0 0
        %915 = vmatpush1.bf16.msra.mxu0 %v746
        %916 = vmatprep.subr.bf16.mxu0 0
        %917 = vmatpush1.bf16.msra.mxu0 %v745
        %918 = vmatprep.subr.bf16.mxu0 0
        %919 = vmatpush1.bf16.msra.mxu0 %v744
        %920 = vmatprep.subr.bf16.mxu0 0
        %921 = vmatpush2.bf16.msra.mxu0 %v759
        %922 = vmatprep.subr.bf16.mxu0 0
        %923 = vmatpush2.bf16.msra.mxu0 %v758
        %924 = vmatprep.subr.bf16.mxu0 0
        %925 = vmatpush2.bf16.msra.mxu0 %v757
        %926 = vmatprep.subr.bf16.mxu0 0
        %927 = vmatpush2.bf16.msra.mxu0 %v756
        %928 = vmatprep.subr.bf16.mxu0 0
        %929 = vmatpush2.bf16.msra.mxu0 %v755
        %930 = vmatprep.subr.bf16.mxu0 0
        %931 = vmatpush2.bf16.msra.mxu0 %v754
        %932 = vmatprep.subr.bf16.mxu0 0
        %933 = vmatpush2.bf16.msra.mxu0 %v753
        %934 = vmatprep.subr.bf16.mxu0 0
        %935 = vmatpush2.bf16.msra.mxu0 %v752
        %936 = vmatprep.mubr.bf16.mxu0 %v492
        %937 = vmatmul.mubr.bf16.gmra.mxu0 %v491
        %v938 = vpop.f32.mrf.mxu0
        %v939 = vadd.f32 %v827, %v938
        %v940 = vpop.f32.mrf.mxu0
        %v941 = vpop.f32.mrf.mxu0
        %v942 = vadd.f32 %v830, %v941
        %v943 = vpop.f32.mrf.mxu0
        %944 = vmatprep.mubr.bf16.mxu0 %v496
        %945 = vmatmul.mubr.bf16.gmra.mxu0 %v495
        %v946 = vpop.f32.mrf.mxu0
        %v947 = vadd.f32 %v835, %v946
        %v948 = vpop.f32.mrf.mxu0
        %v949 = vpop.f32.mrf.mxu0
        %v950 = vadd.f32 %v838, %v949
        %v951 = vpop.f32.mrf.mxu0
        %952 = vmatprep.mubr.bf16.mxu0 %v500
        %953 = vmatmul.mubr.bf16.gmra.mxu0 %v499
        %v954 = vpop.f32.mrf.mxu0
        %v955 = vadd.f32 %v843, %v954
        %v956 = vpop.f32.mrf.mxu0
        %v957 = vpop.f32.mrf.mxu0
        %v958 = vadd.f32 %v846, %v957
        %v959 = vpop.f32.mrf.mxu0
        %960 = vmatprep.mubr.bf16.mxu0 %v504
        %961 = vmatmul.mubr.bf16.gmra.mxu0 %v503
        %v962 = vpop.f32.mrf.mxu0
        %v963 = vadd.f32 %v851, %v962
        %v964 = vpop.f32.mrf.mxu0
        %v965 = vpop.f32.mrf.mxu0
        %v966 = vadd.f32 %v854, %v965
        %v967 = vpop.f32.mrf.mxu0
        %968 = vmatprep.mubr.bf16.mxu0 %v508
        %969 = vmatmul.mubr.bf16.gmra.mxu0 %v507
        %v970 = vpop.f32.mrf.mxu0
        %v971 = vadd.f32 %v859, %v970
        %v972 = vpop.f32.mrf.mxu0
        %v973 = vpop.f32.mrf.mxu0
        %v974 = vadd.f32 %v862, %v973
        %v975 = vpop.f32.mrf.mxu0
        %976 = vmatprep.mubr.bf16.mxu0 %v512
        %977 = vmatmul.mubr.bf16.gmra.mxu0 %v511
        %v978 = vpop.f32.mrf.mxu0
        %v979 = vadd.f32 %v867, %v978
        %v980 = vpop.f32.mrf.mxu0
        %v981 = vpop.f32.mrf.mxu0
        %v982 = vadd.f32 %v870, %v981
        %v983 = vpop.f32.mrf.mxu0
        %984 = vmatprep.mubr.bf16.mxu0 %v516
        %985 = vmatmul.mubr.bf16.gmra.mxu0 %v515
        %v986 = vpop.f32.mrf.mxu0
        %v987 = vadd.f32 %v875, %v986
        %v988 = vpop.f32.mrf.mxu0
        %v989 = vpop.f32.mrf.mxu0
        %v990 = vadd.f32 %v878, %v989
        %v991 = vpop.f32.mrf.mxu0
        %992 = vmatprep.mubr.bf16.mxu0 %v520
        %993 = vmatmul.mubr.bf16.gmra.mxu0 %v519
        %v994 = vpop.f32.mrf.mxu0
        %v995 = vadd.f32 %v883, %v994
        %v996 = vpop.f32.mrf.mxu0
        %v997 = vpop.f32.mrf.mxu0
        %v998 = vadd.f32 %v886, %v997
        %v999 = vpop.f32.mrf.mxu0
        %1000 = vmatprep.mubr.bf16.mxu0 %v524
        %1001 = vmatmul.mubr.bf16.gmra.mxu0 %v523
        %v1002 = vpop.f32.mrf.mxu0
        %v1003 = vadd.f32 %v891, %v1002
        %v1004 = vpop.f32.mrf.mxu0
        %v1005 = vpop.f32.mrf.mxu0
        %v1006 = vadd.f32 %v894, %v1005
        %v1007 = vpop.f32.mrf.mxu0
        %1008 = vmatprep.mubr.bf16.mxu0 %v528
        %1009 = vmatmul.mubr.bf16.gmra.mxu0 %v527
        %v1010 = vpop.f32.mrf.mxu0
        %v1011 = vadd.f32 %v899, %v1010
        %v1012 = vpop.f32.mrf.mxu0
        %v1013 = vpop.f32.mrf.mxu0
        %v1014 = vpop.f32.mrf.mxu0
        %1015 = vdwg.mxu0
        %v1016 = vxor.u32 %v939, 2147483648
        %v1017 = vxor.u32 %v942, 2147483648
        %v1018 = vxor.u32 %v947, 2147483648
        %v1019 = vxor.u32 %v950, 2147483648
        %v1020 = vxor.u32 %v955, 2147483648
        %v1021 = vxor.u32 %v958, 2147483648
        %v1022 = vxor.u32 %v963, 2147483648
        %v1023 = vxor.u32 %v966, 2147483648
        %v1024 = vxor.u32 %v971, 2147483648
        %v1025 = vxor.u32 %v974, 2147483648
        %v1026 = vxor.u32 %v979, 2147483648
        %v1027 = vxor.u32 %v982, 2147483648
        %v1028 = vxor.u32 %v987, 2147483648
        %v1029 = vxor.u32 %v990, 2147483648
        %v1030 = vxor.u32 %v995, 2147483648
        %v1031 = vxor.u32 %v998, 2147483648
        %v1032 = vxor.u32 %v1003, 2147483648
        %v1033 = vxor.u32 %v1006, 2147483648
        %v1034 = vxor.u32 %v1011, 2147483648
        %v1035 = vmul.f32 %v1016, 1.442695
        %v1036 = vpow.pop %v1035
        %v1037 = vmul.f32 %v1017, 1.442695
        %v1038 = vpow.pop %v1037
        %v1039 = vmul.f32 %v1018, 1.442695
        %v1040 = vpow.pop %v1039
        %v1041 = vmul.f32 %v1019, 1.442695
        %v1042 = vpow.pop %v1041
        %v1043 = vmul.f32 %v1020, 1.442695
        %v1044 = vpow.pop %v1043
        %v1045 = vmul.f32 %v1021, 1.442695
        %v1046 = vpow.pop %v1045
        %v1047 = vmul.f32 %v1022, 1.442695
        %v1048 = vpow.pop %v1047
        %v1049 = vmul.f32 %v1023, 1.442695
        %v1050 = vpow.pop %v1049
        %v1051 = vmul.f32 %v1024, 1.442695
        %v1052 = vpow.pop %v1051
        %v1053 = vmul.f32 %v1025, 1.442695
        %v1054 = vpow.pop %v1053
        %v1055 = vmul.f32 %v1026, 1.442695
        %v1056 = vpow.pop %v1055
        %v1057 = vmul.f32 %v1027, 1.442695
        %v1058 = vpow.pop %v1057
        %v1059 = vmul.f32 %v1028, 1.442695
        %v1060 = vpow.pop %v1059
        %v1061 = vmul.f32 %v1029, 1.442695
        %v1062 = vpow.pop %v1061
        %v1063 = vmul.f32 %v1030, 1.442695
        %v1064 = vpow.pop %v1063
        %v1065 = vmul.f32 %v1031, 1.442695
        %v1066 = vpow.pop %v1065
        %v1067 = vmul.f32 %v1032, 1.442695
        %v1068 = vpow.pop %v1067
        %v1069 = vmul.f32 %v1033, 1.442695
        %v1070 = vpow.pop %v1069
        %v1071 = vmul.f32 %v1034, 1.442695
        %v1072 = vpow.pop %v1071
        %v1073 = vadd.f32 %v1036, 1.0
        %v1074 = vadd.f32 %v1038, 1.0
        %v1075 = vadd.f32 %v1040, 1.0
        %v1076 = vadd.f32 %v1042, 1.0
        %v1077 = vadd.f32 %v1044, 1.0
        %v1078 = vadd.f32 %v1046, 1.0
        %v1079 = vadd.f32 %v1048, 1.0
        %v1080 = vadd.f32 %v1050, 1.0
        %v1081 = vadd.f32 %v1052, 1.0
        %v1082 = vadd.f32 %v1054, 1.0
        %v1083 = vadd.f32 %v1056, 1.0
        %v1084 = vadd.f32 %v1058, 1.0
        %v1085 = vadd.f32 %v1060, 1.0
        %v1086 = vadd.f32 %v1062, 1.0
        %v1087 = vadd.f32 %v1064, 1.0
        %v1088 = vadd.f32 %v1066, 1.0
        %v1089 = vadd.f32 %v1068, 1.0
        %v1090 = vadd.f32 %v1070, 1.0
        %v1091 = vadd.f32 %v1072, 1.0
        %v1092 = vrcp.pop %v1073
        %v1093 = vmul.f32 1.0, %v1092
        %v1094 = vrcp.pop %v1074
        %v1095 = vmul.f32 1.0, %v1094
        %v1096 = vrcp.pop %v1075
        %v1097 = vmul.f32 1.0, %v1096
        %v1098 = vrcp.pop %v1076
        %v1099 = vmul.f32 1.0, %v1098
        %v1100 = vrcp.pop %v1077
        %v1101 = vmul.f32 1.0, %v1100
        %v1102 = vrcp.pop %v1078
        %v1103 = vmul.f32 1.0, %v1102
        %v1104 = vrcp.pop %v1079
        %v1105 = vmul.f32 1.0, %v1104
        %v1106 = vrcp.pop %v1080
        %v1107 = vmul.f32 1.0, %v1106
        %v1108 = vrcp.pop %v1081
        %v1109 = vmul.f32 1.0, %v1108
        %v1110 = vrcp.pop %v1082
        %v1111 = vmul.f32 1.0, %v1110
        %v1112 = vrcp.pop %v1083
        %v1113 = vmul.f32 1.0, %v1112
        %v1114 = vrcp.pop %v1084
        %v1115 = vmul.f32 1.0, %v1114
        %v1116 = vrcp.pop %v1085
        %v1117 = vmul.f32 1.0, %v1116
        %v1118 = vrcp.pop %v1086
        %v1119 = vmul.f32 1.0, %v1118
        %v1120 = vrcp.pop %v1087
        %v1121 = vmul.f32 1.0, %v1120
        %v1122 = vrcp.pop %v1088
        %v1123 = vmul.f32 1.0, %v1122
        %v1124 = vrcp.pop %v1089
        %v1125 = vmul.f32 1.0, %v1124
        %v1126 = vrcp.pop %v1090
        %v1127 = vmul.f32 1.0, %v1126
        %v1128 = vrcp.pop %v1091
        %v1129 = vmul.f32 1.0, %v1128
        %v1130 = vpack.c.bf16 %v1095, %v1093
        %v1131 = vpack.c.bf16 %v1099, %v1097
        %v1132 = vpack.c.bf16 %v1103, %v1101
        %v1133 = vpack.c.bf16 %v1107, %v1105
        %v1134 = vpack.c.bf16 %v1111, %v1109
        %v1135 = vpack.c.bf16 %v1115, %v1113
        %v1136 = vpack.c.bf16 %v1119, %v1117
        %v1137 = vpack.c.bf16 %v1123, %v1121
        %v1138 = vpack.c.bf16 %v1127, %v1125
        %v1139 = vpack.c.bf16 %v1129, %v1129
        %v1140 = vld [vmem:[#allocation7] sm:$0xf]
        %v1141 = vld [vmem:[#allocation7 + $0x4] sm:$0xf]
        %v1142 = vld [vmem:[#allocation7 + $0x8] sm:$0xf]
        %v1143 = vld [vmem:[#allocation7 + $0xc] sm:$0xf]
        %v1144 = vld [vmem:[#allocation7 + $0x10] sm:$0xf]
        %v1145 = vld [vmem:[#allocation7 + $0x14] sm:$0xf]
        %v1146 = vld [vmem:[#allocation7 + $0x18] sm:$0xf]
        %v1147 = vld [vmem:[#allocation7 + $0x1c] sm:$0xf]
        %v1148 = vld [vmem:[#allocation7 + $0x20] sm:$0xf]
        %v1149 = vld [vmem:[#allocation7 + $0x24] sm:$0xf]
        %v1150 = vld [vmem:[#allocation7 + $0x28] sm:$0xf]
        %v1151 = vld [vmem:[#allocation7 + $0x2c] sm:$0xf]
        %v1152 = vld [vmem:[#allocation7 + $0x30] sm:$0xf]
        %v1153 = vld [vmem:[#allocation7 + $0x34] sm:$0xf]
        %v1154 = vld [vmem:[#allocation7 + $0x38] sm:$0xf]
        %v1155 = vld [vmem:[#allocation7 + $0x3c] sm:$0xf]
        %v1156 = vld [vmem:[%s4] sm:$0x1]
        %v1158 = vlaneseq
        %v1159 = vshrl.u32 %v1158, 7
        %v1160 = vsub.s32 0, %v1159
        %v1161 = vrot.slane %v1156, %v1160
        %v1179 = vunpack.c.l.b16 %v1140
        %v1180 = vunpack.c.l.b16 %v1141
        %v1181 = vunpack.c.l.b16 %v1142
        %v1182 = vunpack.c.l.b16 %v1143
        %v1183 = vunpack.c.l.b16 %v1144
        %v1184 = vunpack.c.l.b16 %v1145
        %v1185 = vunpack.c.l.b16 %v1146
        %v1186 = vunpack.c.l.b16 %v1147
        %v1187 = vunpack.c.l.b16 %v1148
        %v1188 = vunpack.c.l.b16 %v1149
        %v1189 = vunpack.c.l.b16 %v1150
        %v1190 = vunpack.c.l.b16 %v1151
        %v1191 = vunpack.c.l.b16 %v1152
        %v1192 = vunpack.c.l.b16 %v1153
        %v1193 = vunpack.c.l.b16 %v1154
        %v1194 = vunpack.c.l.b16 %v1155
        %v1195 = vpack.c.b16 %v1180, %v1179
        %v1196 = vpack.c.b16 %v1182, %v1181
        %v1197 = vpack.c.b16 %v1184, %v1183
        %v1198 = vpack.c.b16 %v1186, %v1185
        %v1199 = vpack.c.b16 %v1188, %v1187
        %v1200 = vpack.c.b16 %v1190, %v1189
        %v1201 = vpack.c.b16 %v1192, %v1191
        %v1202 = vpack.c.b16 %v1194, %v1193
        %1211 = vmatprep.subr.bf16.mxu0 0
        %1212 = vmatpush1.bf16.msra.mxu0 %v1202
        %1213 = vmatprep.subr.bf16.mxu0 0
        %1214 = vmatpush1.bf16.msra.mxu0 %v1201
        %1215 = vmatprep.subr.bf16.mxu0 0
        %1216 = vmatpush1.bf16.msra.mxu0 %v1200
        %1217 = vmatprep.subr.bf16.mxu0 0
        %1218 = vmatpush1.bf16.msra.mxu0 %v1199
        %1219 = vmatprep.subr.bf16.mxu0 0
        %1220 = vmatpush1.bf16.msra.mxu0 %v1198
        %1221 = vmatprep.subr.bf16.mxu0 0
        %1222 = vmatpush1.bf16.msra.mxu0 %v1197
        %1223 = vmatprep.subr.bf16.mxu0 0
        %1224 = vmatpush1.bf16.msra.mxu0 %v1196
        %1225 = vmatprep.subr.bf16.mxu0 0
        %1226 = vmatpush1.bf16.msra.mxu0 %v1195
        %1227 = vmatprep.subr.bf16.mxu0 0
        %1228 = vmatpush2.bf16.msra.mxu0 0
        %1229 = vmatprep.subr.bf16.mxu0 0
        %1230 = vmatpush2.bf16.msra.mxu0 0
        %1231 = vmatprep.subr.bf16.mxu0 0
        %1232 = vmatpush2.bf16.msra.mxu0 0
        %1233 = vmatprep.subr.bf16.mxu0 0
        %1234 = vmatpush2.bf16.msra.mxu0 0
        %1235 = vmatprep.subr.bf16.mxu0 0
        %1236 = vmatpush2.bf16.msra.mxu0 0
        %1237 = vmatprep.subr.bf16.mxu0 0
        %1238 = vmatpush2.bf16.msra.mxu0 0
        %1239 = vmatprep.subr.bf16.mxu0 0
        %1240 = vmatpush2.bf16.msra.mxu0 0
        %1241 = vmatprep.subr.bf16.mxu0 0
        %1242 = vmatpush2.bf16.msra.mxu0 0
        %1243 = vmatprep.mubr.bf16.mxu0 0
        %1244 = vmatmul.mubr.bf16.gmra.mxu0 %v1130
        %v1245 = vpop.f32.mrf.mxu0
        %v1246 = vadd.f32 %v1161, %v1245
        %v1247 = vpop.f32.mrf.mxu0
        %v1248 = vpop.f32.mrf.mxu0
        %v1249 = vadd.f32 %v1161, %v1248
        %v1250 = vpop.f32.mrf.mxu0
        %1251 = vmatprep.mubr.bf16.mxu0 0
        %1252 = vmatmul.mubr.bf16.gmra.mxu0 %v1131
        %v1253 = vpop.f32.mrf.mxu0
        %v1254 = vadd.f32 %v1161, %v1253
        %v1255 = vpop.f32.mrf.mxu0
        %v1256 = vpop.f32.mrf.mxu0
        %v1257 = vadd.f32 %v1161, %v1256
        %v1258 = vpop.f32.mrf.mxu0
        %1259 = vmatprep.mubr.bf16.mxu0 0
        %1260 = vmatmul.mubr.bf16.gmra.mxu0 %v1132
        %v1261 = vpop.f32.mrf.mxu0
        %v1262 = vadd.f32 %v1161, %v1261
        %v1263 = vpop.f32.mrf.mxu0
        %v1264 = vpop.f32.mrf.mxu0
        %v1265 = vadd.f32 %v1161, %v1264
        %v1266 = vpop.f32.mrf.mxu0
        %1267 = vmatprep.mubr.bf16.mxu0 0
        %1268 = vmatmul.mubr.bf16.gmra.mxu0 %v1133
        %v1269 = vpop.f32.mrf.mxu0
        %v1270 = vadd.f32 %v1161, %v1269
        %v1271 = vpop.f32.mrf.mxu0
        %v1272 = vpop.f32.mrf.mxu0
        %v1273 = vadd.f32 %v1161, %v1272
        %v1274 = vpop.f32.mrf.mxu0
        %1275 = vmatprep.mubr.bf16.mxu0 0
        %1276 = vmatmul.mubr.bf16.gmra.mxu0 %v1134
        %v1277 = vpop.f32.mrf.mxu0
        %v1278 = vadd.f32 %v1161, %v1277
        %v1279 = vpop.f32.mrf.mxu0
        %v1280 = vpop.f32.mrf.mxu0
        %v1281 = vadd.f32 %v1161, %v1280
        %v1282 = vpop.f32.mrf.mxu0
        %1283 = vmatprep.mubr.bf16.mxu0 0
        %1284 = vmatmul.mubr.bf16.gmra.mxu0 %v1135
        %v1285 = vpop.f32.mrf.mxu0
        %v1286 = vadd.f32 %v1161, %v1285
        %v1287 = vpop.f32.mrf.mxu0
        %v1288 = vpop.f32.mrf.mxu0
        %v1289 = vadd.f32 %v1161, %v1288
        %v1290 = vpop.f32.mrf.mxu0
        %1291 = vmatprep.mubr.bf16.mxu0 0
        %1292 = vmatmul.mubr.bf16.gmra.mxu0 %v1136
        %v1293 = vpop.f32.mrf.mxu0
        %v1294 = vadd.f32 %v1161, %v1293
        %v1295 = vpop.f32.mrf.mxu0
        %v1296 = vpop.f32.mrf.mxu0
        %v1297 = vadd.f32 %v1161, %v1296
        %v1298 = vpop.f32.mrf.mxu0
        %1299 = vmatprep.mubr.bf16.mxu0 0
        %1300 = vmatmul.mubr.bf16.gmra.mxu0 %v1137
        %v1301 = vpop.f32.mrf.mxu0
        %v1302 = vadd.f32 %v1161, %v1301
        %v1303 = vpop.f32.mrf.mxu0
        %v1304 = vpop.f32.mrf.mxu0
        %v1305 = vadd.f32 %v1161, %v1304
        %v1306 = vpop.f32.mrf.mxu0
        %1307 = vmatprep.mubr.bf16.mxu0 0
        %1308 = vmatmul.mubr.bf16.gmra.mxu0 %v1138
        %v1309 = vpop.f32.mrf.mxu0
        %v1310 = vadd.f32 %v1161, %v1309
        %v1311 = vpop.f32.mrf.mxu0
        %v1312 = vpop.f32.mrf.mxu0
        %v1313 = vadd.f32 %v1161, %v1312
        %v1314 = vpop.f32.mrf.mxu0
        %1315 = vmatprep.mubr.bf16.mxu0 0
        %1316 = vmatmul.mubr.bf16.gmra.mxu0 %v1139
        %v1317 = vpop.f32.mrf.mxu0
        %v1318 = vadd.f32 %v1161, %v1317
        %v1319 = vpop.f32.mrf.mxu0
        %v1320 = vpop.f32.mrf.mxu0
        %v1321 = vpop.f32.mrf.mxu0
        %1322 = vdwg.mxu0
        %v1323 = vxor.u32 %v1246, 2147483648
        %v1324 = vxor.u32 %v1249, 2147483648
        %v1325 = vxor.u32 %v1254, 2147483648
        %v1326 = vxor.u32 %v1257, 2147483648
        %v1327 = vxor.u32 %v1262, 2147483648
        %v1328 = vxor.u32 %v1265, 2147483648
        %v1329 = vxor.u32 %v1270, 2147483648
        %v1330 = vxor.u32 %v1273, 2147483648
        %v1331 = vxor.u32 %v1278, 2147483648
        %v1332 = vxor.u32 %v1281, 2147483648
        %v1333 = vxor.u32 %v1286, 2147483648
        %v1334 = vxor.u32 %v1289, 2147483648
        %v1335 = vxor.u32 %v1294, 2147483648
        %v1336 = vxor.u32 %v1297, 2147483648
        %v1337 = vxor.u32 %v1302, 2147483648
        %v1338 = vxor.u32 %v1305, 2147483648
        %v1339 = vxor.u32 %v1310, 2147483648
        %v1340 = vxor.u32 %v1313, 2147483648
        %v1341 = vxor.u32 %v1318, 2147483648
        %v1342 = vmul.f32 %v1323, 1.442695
        %v1343 = vpow.pop %v1342
        %v1344 = vmul.f32 %v1324, 1.442695
        %v1345 = vpow.pop %v1344
        %v1346 = vmul.f32 %v1325, 1.442695
        %v1347 = vpow.pop %v1346
        %v1348 = vmul.f32 %v1326, 1.442695
        %v1349 = vpow.pop %v1348
        %v1350 = vmul.f32 %v1327, 1.442695
        %v1351 = vpow.pop %v1350
        %v1352 = vmul.f32 %v1328, 1.442695
        %v1353 = vpow.pop %v1352
        %v1354 = vmul.f32 %v1329, 1.442695
        %v1355 = vpow.pop %v1354
        %v1356 = vmul.f32 %v1330, 1.442695
        %v1357 = vpow.pop %v1356
        %v1358 = vmul.f32 %v1331, 1.442695
        %v1359 = vpow.pop %v1358
        %v1360 = vmul.f32 %v1332, 1.442695
        %v1361 = vpow.pop %v1360
        %v1362 = vmul.f32 %v1333, 1.442695
        %v1363 = vpow.pop %v1362
        %v1364 = vmul.f32 %v1334, 1.442695
        %v1365 = vpow.pop %v1364
        %v1366 = vmul.f32 %v1335, 1.442695
        %v1367 = vpow.pop %v1366
        %v1368 = vmul.f32 %v1336, 1.442695
        %v1369 = vpow.pop %v1368
        %v1370 = vmul.f32 %v1337, 1.442695
        %v1371 = vpow.pop %v1370
        %v1372 = vmul.f32 %v1338, 1.442695
        %v1373 = vpow.pop %v1372
        %v1374 = vmul.f32 %v1339, 1.442695
        %v1375 = vpow.pop %v1374
        %v1376 = vmul.f32 %v1340, 1.442695
        %v1377 = vpow.pop %v1376
        %v1378 = vmul.f32 %v1341, 1.442695
        %v1379 = vpow.pop %v1378
        %v1380 = vadd.f32 %v1343, 1.0
        %v1381 = vadd.f32 %v1345, 1.0
        %v1382 = vadd.f32 %v1347, 1.0
        %v1383 = vadd.f32 %v1349, 1.0
        %v1384 = vadd.f32 %v1351, 1.0
        %v1385 = vadd.f32 %v1353, 1.0
        %v1386 = vadd.f32 %v1355, 1.0
        %v1387 = vadd.f32 %v1357, 1.0
        %v1388 = vadd.f32 %v1359, 1.0
        %v1389 = vadd.f32 %v1361, 1.0
        %v1390 = vadd.f32 %v1363, 1.0
        %v1391 = vadd.f32 %v1365, 1.0
        %v1392 = vadd.f32 %v1367, 1.0
        %v1393 = vadd.f32 %v1369, 1.0
        %v1394 = vadd.f32 %v1371, 1.0
        %v1395 = vadd.f32 %v1373, 1.0
        %v1396 = vadd.f32 %v1375, 1.0
        %v1397 = vadd.f32 %v1377, 1.0
        %v1398 = vadd.f32 %v1379, 1.0
        %v1399 = vrcp.pop %v1380
        %v1400 = vmul.f32 1.0, %v1399
        %v1401 = vrcp.pop %v1381
        %v1402 = vmul.f32 1.0, %v1401
        %v1403 = vrcp.pop %v1382
        %v1404 = vmul.f32 1.0, %v1403
        %v1405 = vrcp.pop %v1383
        %v1406 = vmul.f32 1.0, %v1405
        %v1407 = vrcp.pop %v1384
        %v1408 = vmul.f32 1.0, %v1407
        %v1409 = vrcp.pop %v1385
        %v1410 = vmul.f32 1.0, %v1409
        %v1411 = vrcp.pop %v1386
        %v1412 = vmul.f32 1.0, %v1411
        %v1413 = vrcp.pop %v1387
        %v1414 = vmul.f32 1.0, %v1413
        %v1415 = vrcp.pop %v1388
        %v1416 = vmul.f32 1.0, %v1415
        %v1417 = vrcp.pop %v1389
        %v1418 = vmul.f32 1.0, %v1417
        %v1419 = vrcp.pop %v1390
        %v1420 = vmul.f32 1.0, %v1419
        %v1421 = vrcp.pop %v1391
        %v1422 = vmul.f32 1.0, %v1421
        %v1423 = vrcp.pop %v1392
        %v1424 = vmul.f32 1.0, %v1423
        %v1425 = vrcp.pop %v1393
        %v1426 = vmul.f32 1.0, %v1425
        %v1427 = vrcp.pop %v1394
        %v1428 = vmul.f32 1.0, %v1427
        %v1429 = vrcp.pop %v1395
        %v1430 = vmul.f32 1.0, %v1429
        %v1431 = vrcp.pop %v1396
        %v1432 = vmul.f32 1.0, %v1431
        %v1433 = vrcp.pop %v1397
        %v1434 = vmul.f32 1.0, %v1433
        %v1435 = vrcp.pop %v1398
        %v1436 = vmul.f32 1.0, %v1435
        %v1437 = vpack.c.bf16 %v1402, %v1400
        %v1438 = vpack.c.bf16 %v1406, %v1404
        %v1439 = vpack.c.bf16 %v1410, %v1408
        %v1440 = vpack.c.bf16 %v1414, %v1412
        %v1441 = vpack.c.bf16 %v1418, %v1416
        %v1442 = vpack.c.bf16 %v1422, %v1420
        %v1443 = vpack.c.bf16 %v1426, %v1424
        %v1444 = vpack.c.bf16 %v1430, %v1428
        %v1445 = vpack.c.bf16 %v1434, %v1432
        %v1446 = vpack.c.bf16 %v1436, %v1436
        %v1447 = vld [vmem:[#allocation8] sm:$0xf]
        %v1448 = vld [vmem:[#allocation8 + $0x4] sm:$0xf]
        %v1449 = vld [vmem:[#allocation8 + $0x8] sm:$0xf]
        %v1450 = vld [vmem:[#allocation8 + $0xc] sm:$0xf]
        %v1451 = vld [vmem:[#allocation8 + $0x10] sm:$0xf]
        %v1452 = vld [vmem:[#allocation8 + $0x14] sm:$0xf]
        %v1453 = vld [vmem:[#allocation8 + $0x18] sm:$0xf]
        %v1454 = vld [vmem:[#allocation8 + $0x1c] sm:$0xf]
        %v1455 = vld [vmem:[#allocation8 + $0x20] sm:$0xf]
        %v1456 = vld [vmem:[#allocation8 + $0x24] sm:$0xf]
        %v1457 = vld [vmem:[#allocation8 + $0x28] sm:$0xf]
        %v1458 = vld [vmem:[#allocation8 + $0x2c] sm:$0xf]
        %v1459 = vld [vmem:[#allocation8 + $0x30] sm:$0xf]
        %v1460 = vld [vmem:[#allocation8 + $0x34] sm:$0xf]
        %v1461 = vld [vmem:[#allocation8 + $0x38] sm:$0xf]
        %v1462 = vld [vmem:[#allocation8 + $0x3c] sm:$0xf]
        %v1463 = vld [vmem:[%s6] sm:$0x1]
        %v1465 = vlaneseq
        %v1466 = vshrl.u32 %v1465, 7
        %v1467 = vsub.s32 0, %v1466
        %v1468 = vrot.slane %v1463, %v1467
        %v1486 = vunpack.c.l.b16 %v1447
        %v1487 = vunpack.c.l.b16 %v1448
        %v1488 = vunpack.c.l.b16 %v1449
        %v1489 = vunpack.c.l.b16 %v1450
        %v1490 = vunpack.c.l.b16 %v1451
        %v1491 = vunpack.c.l.b16 %v1452
        %v1492 = vunpack.c.l.b16 %v1453
        %v1493 = vunpack.c.l.b16 %v1454
        %v1494 = vunpack.c.l.b16 %v1455
        %v1495 = vunpack.c.l.b16 %v1456
        %v1496 = vunpack.c.l.b16 %v1457
        %v1497 = vunpack.c.l.b16 %v1458
        %v1498 = vunpack.c.l.b16 %v1459
        %v1499 = vunpack.c.l.b16 %v1460
        %v1500 = vunpack.c.l.b16 %v1461
        %v1501 = vunpack.c.l.b16 %v1462
        %v1502 = vpack.c.b16 %v1487, %v1486
        %v1503 = vpack.c.b16 %v1489, %v1488
        %v1504 = vpack.c.b16 %v1491, %v1490
        %v1505 = vpack.c.b16 %v1493, %v1492
        %v1506 = vpack.c.b16 %v1495, %v1494
        %v1507 = vpack.c.b16 %v1497, %v1496
        %v1508 = vpack.c.b16 %v1499, %v1498
        %v1509 = vpack.c.b16 %v1501, %v1500
        %1518 = vmatprep.subr.bf16.mxu0 0
        %1519 = vmatpush1.bf16.msra.mxu0 %v1509
        %1520 = vmatprep.subr.bf16.mxu0 0
        %1521 = vmatpush1.bf16.msra.mxu0 %v1508
        %1522 = vmatprep.subr.bf16.mxu0 0
        %1523 = vmatpush1.bf16.msra.mxu0 %v1507
        %1524 = vmatprep.subr.bf16.mxu0 0
        %1525 = vmatpush1.bf16.msra.mxu0 %v1506
        %1526 = vmatprep.subr.bf16.mxu0 0
        %1527 = vmatpush1.bf16.msra.mxu0 %v1505
        %1528 = vmatprep.subr.bf16.mxu0 0
        %1529 = vmatpush1.bf16.msra.mxu0 %v1504
        %1530 = vmatprep.subr.bf16.mxu0 0
        %1531 = vmatpush1.bf16.msra.mxu0 %v1503
        %1532 = vmatprep.subr.bf16.mxu0 0
        %1533 = vmatpush1.bf16.msra.mxu0 %v1502
        %1534 = vmatprep.subr.bf16.mxu0 0
        %1535 = vmatpush2.bf16.msra.mxu0 0
        %1536 = vmatprep.subr.bf16.mxu0 0
        %1537 = vmatpush2.bf16.msra.mxu0 0
        %1538 = vmatprep.subr.bf16.mxu0 0
        %1539 = vmatpush2.bf16.msra.mxu0 0
        %1540 = vmatprep.subr.bf16.mxu0 0
        %1541 = vmatpush2.bf16.msra.mxu0 0
        %1542 = vmatprep.subr.bf16.mxu0 0
        %1543 = vmatpush2.bf16.msra.mxu0 0
        %1544 = vmatprep.subr.bf16.mxu0 0
        %1545 = vmatpush2.bf16.msra.mxu0 0
        %1546 = vmatprep.subr.bf16.mxu0 0
        %1547 = vmatpush2.bf16.msra.mxu0 0
        %1548 = vmatprep.subr.bf16.mxu0 0
        %1549 = vmatpush2.bf16.msra.mxu0 0
        %1550 = vmatprep.mubr.bf16.mxu0 0
        %1551 = vmatmul.mubr.bf16.gmra.mxu0 %v1437
        %v1552 = vpop.f32.mrf.mxu0
        %v1553 = vadd.f32 %v1468, %v1552
        %v1554 = vpop.f32.mrf.mxu0
        %v1555 = vpop.f32.mrf.mxu0
        %v1556 = vadd.f32 %v1468, %v1555
        %v1557 = vpop.f32.mrf.mxu0
        %1558 = vmatprep.mubr.bf16.mxu0 0
        %1559 = vmatmul.mubr.bf16.gmra.mxu0 %v1438
        %v1560 = vpop.f32.mrf.mxu0
        %v1561 = vadd.f32 %v1468, %v1560
        %v1562 = vpop.f32.mrf.mxu0
        %v1563 = vpop.f32.mrf.mxu0
        %v1564 = vadd.f32 %v1468, %v1563
        %v1565 = vpop.f32.mrf.mxu0
        %1566 = vmatprep.mubr.bf16.mxu0 0
        %1567 = vmatmul.mubr.bf16.gmra.mxu0 %v1439
        %v1568 = vpop.f32.mrf.mxu0
        %v1569 = vadd.f32 %v1468, %v1568
        %v1570 = vpop.f32.mrf.mxu0
        %v1571 = vpop.f32.mrf.mxu0
        %v1572 = vadd.f32 %v1468, %v1571
        %v1573 = vpop.f32.mrf.mxu0
        %1574 = vmatprep.mubr.bf16.mxu0 0
        %1575 = vmatmul.mubr.bf16.gmra.mxu0 %v1440
        %v1576 = vpop.f32.mrf.mxu0
        %v1577 = vadd.f32 %v1468, %v1576
        %v1578 = vpop.f32.mrf.mxu0
        %v1579 = vpop.f32.mrf.mxu0
        %v1580 = vadd.f32 %v1468, %v1579
        %v1581 = vpop.f32.mrf.mxu0
        %1582 = vmatprep.mubr.bf16.mxu0 0
        %1583 = vmatmul.mubr.bf16.gmra.mxu0 %v1441
        %v1584 = vpop.f32.mrf.mxu0
        %v1585 = vadd.f32 %v1468, %v1584
        %v1586 = vpop.f32.mrf.mxu0
        %v1587 = vpop.f32.mrf.mxu0
        %v1588 = vadd.f32 %v1468, %v1587
        %v1589 = vpop.f32.mrf.mxu0
        %1590 = vmatprep.mubr.bf16.mxu0 0
        %1591 = vmatmul.mubr.bf16.gmra.mxu0 %v1442
        %v1592 = vpop.f32.mrf.mxu0
        %v1593 = vadd.f32 %v1468, %v1592
        %v1594 = vpop.f32.mrf.mxu0
        %v1595 = vpop.f32.mrf.mxu0
        %v1596 = vadd.f32 %v1468, %v1595
        %v1597 = vpop.f32.mrf.mxu0
        %1598 = vmatprep.mubr.bf16.mxu0 0
        %1599 = vmatmul.mubr.bf16.gmra.mxu0 %v1443
        %v1600 = vpop.f32.mrf.mxu0
        %v1601 = vadd.f32 %v1468, %v1600
        %v1602 = vpop.f32.mrf.mxu0
        %v1603 = vpop.f32.mrf.mxu0
        %v1604 = vadd.f32 %v1468, %v1603
        %v1605 = vpop.f32.mrf.mxu0
        %1606 = vmatprep.mubr.bf16.mxu0 0
        %1607 = vmatmul.mubr.bf16.gmra.mxu0 %v1444
        %v1608 = vpop.f32.mrf.mxu0
        %v1609 = vadd.f32 %v1468, %v1608
        %v1610 = vpop.f32.mrf.mxu0
        %v1611 = vpop.f32.mrf.mxu0
        %v1612 = vadd.f32 %v1468, %v1611
        %v1613 = vpop.f32.mrf.mxu0
        %1614 = vmatprep.mubr.bf16.mxu0 0
        %1615 = vmatmul.mubr.bf16.gmra.mxu0 %v1445
        %v1616 = vpop.f32.mrf.mxu0
        %v1617 = vadd.f32 %v1468, %v1616
        %v1618 = vpop.f32.mrf.mxu0
        %v1619 = vpop.f32.mrf.mxu0
        %v1620 = vadd.f32 %v1468, %v1619
        %v1621 = vpop.f32.mrf.mxu0
        %1622 = vmatprep.mubr.bf16.mxu0 0
        %1623 = vmatmul.mubr.bf16.gmra.mxu0 %v1446
        %v1624 = vpop.f32.mrf.mxu0
        %v1625 = vadd.f32 %v1468, %v1624
        %v1626 = vpop.f32.mrf.mxu0
        %v1627 = vpop.f32.mrf.mxu0
        %v1628 = vpop.f32.mrf.mxu0
        %1629 = vdwg.mxu0
        %v1630 = vxor.u32 %v1553, 2147483648
        %v1631 = vxor.u32 %v1556, 2147483648
        %v1632 = vxor.u32 %v1561, 2147483648
        %v1633 = vxor.u32 %v1564, 2147483648
        %v1634 = vxor.u32 %v1569, 2147483648
        %v1635 = vxor.u32 %v1572, 2147483648
        %v1636 = vxor.u32 %v1577, 2147483648
        %v1637 = vxor.u32 %v1580, 2147483648
        %v1638 = vxor.u32 %v1585, 2147483648
        %v1639 = vxor.u32 %v1588, 2147483648
        %v1640 = vxor.u32 %v1593, 2147483648
        %v1641 = vxor.u32 %v1596, 2147483648
        %v1642 = vxor.u32 %v1601, 2147483648
        %v1643 = vxor.u32 %v1604, 2147483648
        %v1644 = vxor.u32 %v1609, 2147483648
        %v1645 = vxor.u32 %v1612, 2147483648
        %v1646 = vxor.u32 %v1617, 2147483648
        %v1647 = vxor.u32 %v1620, 2147483648
        %v1648 = vxor.u32 %v1625, 2147483648
        %v1649 = vmul.f32 %v1630, 1.442695
        %v1650 = vpow.pop %v1649
        %v1651 = vmul.f32 %v1631, 1.442695
        %v1652 = vpow.pop %v1651
        %v1653 = vmul.f32 %v1632, 1.442695
        %v1654 = vpow.pop %v1653
        %v1655 = vmul.f32 %v1633, 1.442695
        %v1656 = vpow.pop %v1655
        %v1657 = vmul.f32 %v1634, 1.442695
        %v1658 = vpow.pop %v1657
        %v1659 = vmul.f32 %v1635, 1.442695
        %v1660 = vpow.pop %v1659
        %v1661 = vmul.f32 %v1636, 1.442695
        %v1662 = vpow.pop %v1661
        %v1663 = vmul.f32 %v1637, 1.442695
        %v1664 = vpow.pop %v1663
        %v1665 = vmul.f32 %v1638, 1.442695
        %v1666 = vpow.pop %v1665
        %v1667 = vmul.f32 %v1639, 1.442695
        %v1668 = vpow.pop %v1667
        %v1669 = vmul.f32 %v1640, 1.442695
        %v1670 = vpow.pop %v1669
        %v1671 = vmul.f32 %v1641, 1.442695
        %v1672 = vpow.pop %v1671
        %v1673 = vmul.f32 %v1642, 1.442695
        %v1674 = vpow.pop %v1673
        %v1675 = vmul.f32 %v1643, 1.442695
        %v1676 = vpow.pop %v1675
        %v1677 = vmul.f32 %v1644, 1.442695
        %v1678 = vpow.pop %v1677
        %v1679 = vmul.f32 %v1645, 1.442695
        %v1680 = vpow.pop %v1679
        %v1681 = vmul.f32 %v1646, 1.442695
        %v1682 = vpow.pop %v1681
        %v1683 = vmul.f32 %v1647, 1.442695
        %v1684 = vpow.pop %v1683
        %v1685 = vmul.f32 %v1648, 1.442695
        %v1686 = vpow.pop %v1685
        %v1687 = vadd.f32 %v1650, 1.0
        %v1688 = vadd.f32 %v1652, 1.0
        %v1689 = vadd.f32 %v1654, 1.0
        %v1690 = vadd.f32 %v1656, 1.0
        %v1691 = vadd.f32 %v1658, 1.0
        %v1692 = vadd.f32 %v1660, 1.0
        %v1693 = vadd.f32 %v1662, 1.0
        %v1694 = vadd.f32 %v1664, 1.0
        %v1695 = vadd.f32 %v1666, 1.0
        %v1696 = vadd.f32 %v1668, 1.0
        %v1697 = vadd.f32 %v1670, 1.0
        %v1698 = vadd.f32 %v1672, 1.0
        %v1699 = vadd.f32 %v1674, 1.0
        %v1700 = vadd.f32 %v1676, 1.0
        %v1701 = vadd.f32 %v1678, 1.0
        %v1702 = vadd.f32 %v1680, 1.0
        %v1703 = vadd.f32 %v1682, 1.0
        %v1704 = vadd.f32 %v1684, 1.0
        %v1705 = vadd.f32 %v1686, 1.0
        %v1706 = vrcp.pop %v1687
        %v1707 = vmul.f32 1.0, %v1706
        %v1708 = vrcp.pop %v1688
        %v1709 = vmul.f32 1.0, %v1708
        %v1710 = vrcp.pop %v1689
        %v1711 = vmul.f32 1.0, %v1710
        %v1712 = vrcp.pop %v1690
        %v1713 = vmul.f32 1.0, %v1712
        %v1714 = vrcp.pop %v1691
        %v1715 = vmul.f32 1.0, %v1714
        %v1716 = vrcp.pop %v1692
        %v1717 = vmul.f32 1.0, %v1716
        %v1718 = vrcp.pop %v1693
        %v1719 = vmul.f32 1.0, %v1718
        %v1720 = vrcp.pop %v1694
        %v1721 = vmul.f32 1.0, %v1720
        %v1722 = vrcp.pop %v1695
        %v1723 = vmul.f32 1.0, %v1722
        %v1724 = vrcp.pop %v1696
        %v1725 = vmul.f32 1.0, %v1724
        %v1726 = vrcp.pop %v1697
        %v1727 = vmul.f32 1.0, %v1726
        %v1728 = vrcp.pop %v1698
        %v1729 = vmul.f32 1.0, %v1728
        %v1730 = vrcp.pop %v1699
        %v1731 = vmul.f32 1.0, %v1730
        %v1732 = vrcp.pop %v1700
        %v1733 = vmul.f32 1.0, %v1732
        %v1734 = vrcp.pop %v1701
        %v1735 = vmul.f32 1.0, %v1734
        %v1736 = vrcp.pop %v1702
        %v1737 = vmul.f32 1.0, %v1736
        %v1738 = vrcp.pop %v1703
        %v1739 = vmul.f32 1.0, %v1738
        %v1740 = vrcp.pop %v1704
        %v1741 = vmul.f32 1.0, %v1740
        %v1742 = vrcp.pop %v1705
        %v1743 = vmul.f32 1.0, %v1742
        %v1744 = vpack.c.bf16 %v1709, %v1707
        %v1745 = vpack.c.bf16 %v1713, %v1711
        %v1746 = vpack.c.bf16 %v1717, %v1715
        %v1747 = vpack.c.bf16 %v1721, %v1719
        %v1748 = vpack.c.bf16 %v1725, %v1723
        %v1749 = vpack.c.bf16 %v1729, %v1727
        %v1750 = vpack.c.bf16 %v1733, %v1731
        %v1751 = vpack.c.bf16 %v1737, %v1735
        %v1752 = vpack.c.bf16 %v1741, %v1739
        %v1753 = vpack.c.bf16 %v1743, %v1743
        %v1754 = vld [vmem:[#allocation10] sm:$0xff]
        %v1755 = vld [vmem:[#allocation10 + $0x8] sm:$0xff]
        %v1756 = vld [vmem:[#allocation10 + $0x10] sm:$0xff]
        %v1757 = vld [vmem:[#allocation10 + $0x18] sm:$0xff]
        %v1758 = vld [vmem:[#allocation10 + $0x20] sm:$0xff]
        %v1759 = vld [vmem:[#allocation10 + $0x28] sm:$0xff]
        %v1760 = vld [vmem:[#allocation10 + $0x30] sm:$0xff]
        %v1761 = vld [vmem:[#allocation10 + $0x38] sm:$0xff]
        %v1762 = vld [vmem:[#allocation10 + $0x40] sm:$0xff]
        %v1763 = vld [vmem:[#allocation10 + $0x48] sm:$0xff]
        %v1764 = vld [vmem:[#allocation10 + $0x50] sm:$0xff]
        %v1765 = vld [vmem:[#allocation10 + $0x58] sm:$0xff]
        %v1766 = vld [vmem:[#allocation10 + $0x60] sm:$0xff]
        %v1767 = vld [vmem:[#allocation10 + $0x68] sm:$0xff]
        %v1768 = vld [vmem:[#allocation10 + $0x70] sm:$0xff]
        %v1769 = vld [vmem:[#allocation10 + $0x78] sm:$0xff]
        %v1770 = vld [vmem:[#allocation10 + $0x80] sm:$0xff]
        %v1771 = vld [vmem:[#allocation10 + $0x88] sm:$0xff]
        %v1772 = vld [vmem:[#allocation10 + $0x90] sm:$0xff]
        %v1773 = vld [vmem:[#allocation10 + $0x98] sm:$0xff]
        %v1774 = vld [vmem:[#allocation10 + $0xa0] sm:$0xff]
        %v1775 = vld [vmem:[#allocation10 + $0xa8] sm:$0xff]
        %v1776 = vld [vmem:[#allocation10 + $0xb0] sm:$0xff]
        %v1777 = vld [vmem:[#allocation10 + $0xb8] sm:$0xff]
        %v1778 = vld [vmem:[#allocation10 + $0xc0] sm:$0xff]
        %v1779 = vld [vmem:[#allocation10 + $0xc8] sm:$0xff]
        %v1780 = vld [vmem:[#allocation10 + $0xd0] sm:$0xff]
        %v1781 = vld [vmem:[#allocation10 + $0xd8] sm:$0xff]
        %v1782 = vld [vmem:[#allocation10 + $0xe0] sm:$0xff]
        %v1783 = vld [vmem:[#allocation10 + $0xe8] sm:$0xff]
        %v1784 = vld [vmem:[#allocation10 + $0xf0] sm:$0xff]
        %v1785 = vld [vmem:[#allocation10 + $0xf8] sm:$0xff]
        %v1786 = vld [vmem:[%s8] sm:$0xf]
        %v1788 = vlaneseq
        %v1789 = vshrl.u32 %v1788, 7
        %v1790 = vsub.s32 0, %v1789
        %v1791 = vrot.slane %v1786, %v1790
        %v1792 = vlaneseq
        %v1793 = vshrl.u32 %v1792, 7
        %v1794 = vsub.s32 1, %v1793
        %v1795 = vrot.slane %v1786, %v1794
        %v1796 = vlaneseq
        %v1797 = vshrl.u32 %v1796, 7
        %v1798 = vsub.s32 2, %v1797
        %v1799 = vrot.slane %v1786, %v1798
        %v1800 = vlaneseq
        %v1801 = vshrl.u32 %v1800, 7
        %v1802 = vsub.s32 3, %v1801
        %v1803 = vrot.slane %v1786, %v1802
        %v1840 = vunpack.c.l.b16 %v1754
        %v1841 = vunpack.c.h.b16 %v1754
        %v1842 = vunpack.c.l.b16 %v1755
        %v1843 = vunpack.c.h.b16 %v1755
        %v1844 = vunpack.c.l.b16 %v1756
        %v1845 = vunpack.c.h.b16 %v1756
        %v1846 = vunpack.c.l.b16 %v1757
        %v1847 = vunpack.c.h.b16 %v1757
        %v1848 = vunpack.c.l.b16 %v1758
        %v1849 = vunpack.c.h.b16 %v1758
        %v1850 = vunpack.c.l.b16 %v1759
        %v1851 = vunpack.c.h.b16 %v1759
        %v1852 = vunpack.c.l.b16 %v1760
        %v1853 = vunpack.c.h.b16 %v1760
        %v1854 = vunpack.c.l.b16 %v1761
        %v1855 = vunpack.c.h.b16 %v1761
        %v1856 = vunpack.c.l.b16 %v1762
        %v1857 = vunpack.c.h.b16 %v1762
        %v1858 = vunpack.c.l.b16 %v1763
        %v1859 = vunpack.c.h.b16 %v1763
        %v1860 = vunpack.c.l.b16 %v1764
        %v1861 = vunpack.c.h.b16 %v1764
        %v1862 = vunpack.c.l.b16 %v1765
        %v1863 = vunpack.c.h.b16 %v1765
        %v1864 = vunpack.c.l.b16 %v1766
        %v1865 = vunpack.c.h.b16 %v1766
        %v1866 = vunpack.c.l.b16 %v1767
        %v1867 = vunpack.c.h.b16 %v1767
        %v1868 = vunpack.c.l.b16 %v1768
        %v1869 = vunpack.c.h.b16 %v1768
        %v1870 = vunpack.c.l.b16 %v1769
        %v1871 = vunpack.c.h.b16 %v1769
        %v1872 = vunpack.c.l.b16 %v1770
        %v1873 = vunpack.c.h.b16 %v1770
        %v1874 = vunpack.c.l.b16 %v1771
        %v1875 = vunpack.c.h.b16 %v1771
        %v1876 = vunpack.c.l.b16 %v1772
        %v1877 = vunpack.c.h.b16 %v1772
        %v1878 = vunpack.c.l.b16 %v1773
        %v1879 = vunpack.c.h.b16 %v1773
        %v1880 = vunpack.c.l.b16 %v1774
        %v1881 = vunpack.c.h.b16 %v1774
        %v1882 = vunpack.c.l.b16 %v1775
        %v1883 = vunpack.c.h.b16 %v1775
        %v1884 = vunpack.c.l.b16 %v1776
        %v1885 = vunpack.c.h.b16 %v1776
        %v1886 = vunpack.c.l.b16 %v1777
        %v1887 = vunpack.c.h.b16 %v1777
        %v1888 = vunpack.c.l.b16 %v1778
        %v1889 = vunpack.c.h.b16 %v1778
        %v1890 = vunpack.c.l.b16 %v1779
        %v1891 = vunpack.c.h.b16 %v1779
        %v1892 = vunpack.c.l.b16 %v1780
        %v1893 = vunpack.c.h.b16 %v1780
        %v1894 = vunpack.c.l.b16 %v1781
        %v1895 = vunpack.c.h.b16 %v1781
        %v1896 = vunpack.c.l.b16 %v1782
        %v1897 = vunpack.c.h.b16 %v1782
        %v1898 = vunpack.c.l.b16 %v1783
        %v1899 = vunpack.c.h.b16 %v1783
        %v1900 = vunpack.c.l.b16 %v1784
        %v1901 = vunpack.c.h.b16 %v1784
        %v1902 = vunpack.c.l.b16 %v1785
        %v1903 = vunpack.c.h.b16 %v1785
        %v1904 = vpack.c.b16 %v1844, %v1840
        %v1905 = vpack.c.b16 %v1845, %v1841
        %v1906 = vpack.c.b16 %v1846, %v1842
        %v1907 = vpack.c.b16 %v1847, %v1843
        %v1908 = vpack.c.b16 %v1852, %v1848
        %v1909 = vpack.c.b16 %v1853, %v1849
        %v1910 = vpack.c.b16 %v1854, %v1850
        %v1911 = vpack.c.b16 %v1855, %v1851
        %v1912 = vpack.c.b16 %v1860, %v1856
        %v1913 = vpack.c.b16 %v1861, %v1857
        %v1914 = vpack.c.b16 %v1862, %v1858
        %v1915 = vpack.c.b16 %v1863, %v1859
        %v1916 = vpack.c.b16 %v1868, %v1864
        %v1917 = vpack.c.b16 %v1869, %v1865
        %v1918 = vpack.c.b16 %v1870, %v1866
        %v1919 = vpack.c.b16 %v1871, %v1867
        %v1920 = vpack.c.b16 %v1876, %v1872
        %v1921 = vpack.c.b16 %v1877, %v1873
        %v1922 = vpack.c.b16 %v1878, %v1874
        %v1923 = vpack.c.b16 %v1879, %v1875
        %v1924 = vpack.c.b16 %v1884, %v1880
        %v1925 = vpack.c.b16 %v1885, %v1881
        %v1926 = vpack.c.b16 %v1886, %v1882
        %v1927 = vpack.c.b16 %v1887, %v1883
        %v1928 = vpack.c.b16 %v1892, %v1888
        %v1929 = vpack.c.b16 %v1893, %v1889
        %v1930 = vpack.c.b16 %v1894, %v1890
        %v1931 = vpack.c.b16 %v1895, %v1891
        %v1932 = vpack.c.b16 %v1900, %v1896
        %v1933 = vpack.c.b16 %v1901, %v1897
        %v1934 = vpack.c.b16 %v1902, %v1898
        %v1935 = vpack.c.b16 %v1903, %v1899
        %1968 = vmatprep.subr.bf16.mxu0 %v1933
        %1969 = vmatpush1.bf16.msra.mxu0 %v1932
        %1970 = vmatprep.subr.bf16.mxu0 %v1929
        %1971 = vmatpush1.bf16.msra.mxu0 %v1928
        %1972 = vmatprep.subr.bf16.mxu0 %v1925
        %1973 = vmatpush1.bf16.msra.mxu0 %v1924
        %1974 = vmatprep.subr.bf16.mxu0 %v1921
        %1975 = vmatpush1.bf16.msra.mxu0 %v1920
        %1976 = vmatprep.subr.bf16.mxu0 %v1917
        %1977 = vmatpush1.bf16.msra.mxu0 %v1916
        %1978 = vmatprep.subr.bf16.mxu0 %v1913
        %1979 = vmatpush1.bf16.msra.mxu0 %v1912
        %1980 = vmatprep.subr.bf16.mxu0 %v1909
        %1981 = vmatpush1.bf16.msra.mxu0 %v1908
        %1982 = vmatprep.subr.bf16.mxu0 %v1905
        %1983 = vmatpush1.bf16.msra.mxu0 %v1904
        %1984 = vmatprep.subr.bf16.mxu0 0
        %1985 = vmatpush2.bf16.msra.mxu0 0
        %1986 = vmatprep.subr.bf16.mxu0 0
        %1987 = vmatpush2.bf16.msra.mxu0 0
        %1988 = vmatprep.subr.bf16.mxu0 0
        %1989 = vmatpush2.bf16.msra.mxu0 0
        %1990 = vmatprep.subr.bf16.mxu0 0
        %1991 = vmatpush2.bf16.msra.mxu0 0
        %1992 = vmatprep.subr.bf16.mxu0 0
        %1993 = vmatpush2.bf16.msra.mxu0 0
        %1994 = vmatprep.subr.bf16.mxu0 0
        %1995 = vmatpush2.bf16.msra.mxu0 0
        %1996 = vmatprep.subr.bf16.mxu0 0
        %1997 = vmatpush2.bf16.msra.mxu0 0
        %1998 = vmatprep.subr.bf16.mxu0 0
        %1999 = vmatpush2.bf16.msra.mxu0 0
        %2000 = vmatprep.mubr.bf16.mxu0 0
        %2001 = vmatmul.mubr.bf16.gmra.mxu0 %v1744
        %v2002 = vpop.f32.mrf.mxu0
        %v2003 = vadd.f32 %v1791, %v2002
        %v2004 = vpop.f32.mrf.mxu0
        %v2005 = vadd.f32 %v1795, %v2004
        %v2006 = vpop.f32.mrf.mxu0
        %v2007 = vadd.f32 %v1791, %v2006
        %v2008 = vpop.f32.mrf.mxu0
        %v2009 = vadd.f32 %v1795, %v2008
        %2010 = vmatprep.mubr.bf16.mxu0 0
        %2011 = vmatmul.mubr.bf16.gmra.mxu0 %v1745
        %v2012 = vpop.f32.mrf.mxu0
        %v2013 = vadd.f32 %v1791, %v2012
        %v2014 = vpop.f32.mrf.mxu0
        %v2015 = vadd.f32 %v1795, %v2014
        %v2016 = vpop.f32.mrf.mxu0
        %v2017 = vadd.f32 %v1791, %v2016
        %v2018 = vpop.f32.mrf.mxu0
        %v2019 = vadd.f32 %v1795, %v2018
        %2020 = vmatprep.mubr.bf16.mxu0 0
        %2021 = vmatmul.mubr.bf16.gmra.mxu0 %v1746
        %v2022 = vpop.f32.mrf.mxu0
        %v2023 = vadd.f32 %v1791, %v2022
        %v2024 = vpop.f32.mrf.mxu0
        %v2025 = vadd.f32 %v1795, %v2024
        %v2026 = vpop.f32.mrf.mxu0
        %v2027 = vadd.f32 %v1791, %v2026
        %v2028 = vpop.f32.mrf.mxu0
        %v2029 = vadd.f32 %v1795, %v2028
        %2030 = vmatprep.mubr.bf16.mxu0 0
        %2031 = vmatmul.mubr.bf16.gmra.mxu0 %v1747
        %v2032 = vpop.f32.mrf.mxu0
        %v2033 = vadd.f32 %v1791, %v2032
        %v2034 = vpop.f32.mrf.mxu0
        %v2035 = vadd.f32 %v1795, %v2034
        %v2036 = vpop.f32.mrf.mxu0
        %v2037 = vadd.f32 %v1791, %v2036
        %v2038 = vpop.f32.mrf.mxu0
        %v2039 = vadd.f32 %v1795, %v2038
        %2040 = vmatprep.mubr.bf16.mxu0 0
        %2041 = vmatmul.mubr.bf16.gmra.mxu0 %v1748
        %v2042 = vpop.f32.mrf.mxu0
        %v2043 = vadd.f32 %v1791, %v2042
        %v2044 = vpop.f32.mrf.mxu0
        %v2045 = vadd.f32 %v1795, %v2044
        %v2046 = vpop.f32.mrf.mxu0
        %v2047 = vadd.f32 %v1791, %v2046
        %v2048 = vpop.f32.mrf.mxu0
        %v2049 = vadd.f32 %v1795, %v2048
        %2050 = vmatprep.mubr.bf16.mxu0 0
        %2051 = vmatmul.mubr.bf16.gmra.mxu0 %v1749
        %v2052 = vpop.f32.mrf.mxu0
        %v2053 = vadd.f32 %v1791, %v2052
        %v2054 = vpop.f32.mrf.mxu0
        %v2055 = vadd.f32 %v1795, %v2054
        %v2056 = vpop.f32.mrf.mxu0
        %v2057 = vadd.f32 %v1791, %v2056
        %v2058 = vpop.f32.mrf.mxu0
        %v2059 = vadd.f32 %v1795, %v2058
        %2060 = vmatprep.mubr.bf16.mxu0 0
        %2061 = vmatmul.mubr.bf16.gmra.mxu0 %v1750
        %v2062 = vpop.f32.mrf.mxu0
        %v2063 = vadd.f32 %v1791, %v2062
        %v2064 = vpop.f32.mrf.mxu0
        %v2065 = vadd.f32 %v1795, %v2064
        %v2066 = vpop.f32.mrf.mxu0
        %v2067 = vadd.f32 %v1791, %v2066
        %v2068 = vpop.f32.mrf.mxu0
        %v2069 = vadd.f32 %v1795, %v2068
        %2070 = vmatprep.mubr.bf16.mxu0 0
        %2071 = vmatmul.mubr.bf16.gmra.mxu0 %v1751
        %v2072 = vpop.f32.mrf.mxu0
        %v2073 = vadd.f32 %v1791, %v2072
        %v2074 = vpop.f32.mrf.mxu0
        %v2075 = vadd.f32 %v1795, %v2074
        %v2076 = vpop.f32.mrf.mxu0
        %v2077 = vadd.f32 %v1791, %v2076
        %v2078 = vpop.f32.mrf.mxu0
        %v2079 = vadd.f32 %v1795, %v2078
        %2080 = vmatprep.mubr.bf16.mxu0 0
        %2081 = vmatmul.mubr.bf16.gmra.mxu0 %v1752
        %v2082 = vpop.f32.mrf.mxu0
        %v2083 = vadd.f32 %v1791, %v2082
        %v2084 = vpop.f32.mrf.mxu0
        %v2085 = vadd.f32 %v1795, %v2084
        %v2086 = vpop.f32.mrf.mxu0
        %v2087 = vadd.f32 %v1791, %v2086
        %v2088 = vpop.f32.mrf.mxu0
        %v2089 = vadd.f32 %v1795, %v2088
        %2090 = vmatprep.mubr.bf16.mxu0 0
        %2091 = vmatmul.mubr.bf16.gmra.mxu0 %v1753
        %v2092 = vpop.f32.mrf.mxu0
        %v2093 = vadd.f32 %v1791, %v2092
        %v2094 = vpop.f32.mrf.mxu0
        %v2095 = vadd.f32 %v1795, %v2094
        %v2096 = vpop.f32.mrf.mxu0
        %v2097 = vpop.f32.mrf.mxu0
        %2098 = vdwg.mxu0
        %2099 = vmatprep.subr.bf16.mxu0 %v1935
        %2100 = vmatpush1.bf16.msra.mxu0 %v1934
        %2101 = vmatprep.subr.bf16.mxu0 %v1931
        %2102 = vmatpush1.bf16.msra.mxu0 %v1930
        %2103 = vmatprep.subr.bf16.mxu0 %v1927
        %2104 = vmatpush1.bf16.msra.mxu0 %v1926
        %2105 = vmatprep.subr.bf16.mxu0 %v1923
        %2106 = vmatpush1.bf16.msra.mxu0 %v1922
        %2107 = vmatprep.subr.bf16.mxu0 %v1919
        %2108 = vmatpush1.bf16.msra.mxu0 %v1918
        %2109 = vmatprep.subr.bf16.mxu0 %v1915
        %2110 = vmatpush1.bf16.msra.mxu0 %v1914
        %2111 = vmatprep.subr.bf16.mxu0 %v1911
        %2112 = vmatpush1.bf16.msra.mxu0 %v1910
        %2113 = vmatprep.subr.bf16.mxu0 %v1907
        %2114 = vmatpush1.bf16.msra.mxu0 %v1906
        %2115 = vmatprep.subr.bf16.mxu0 0
        %2116 = vmatpush2.bf16.msra.mxu0 0
        %2117 = vmatprep.subr.bf16.mxu0 0
        %2118 = vmatpush2.bf16.msra.mxu0 0
        %2119 = vmatprep.subr.bf16.mxu0 0
        %2120 = vmatpush2.bf16.msra.mxu0 0
        %2121 = vmatprep.subr.bf16.mxu0 0
        %2122 = vmatpush2.bf16.msra.mxu0 0
        %2123 = vmatprep.subr.bf16.mxu0 0
        %2124 = vmatpush2.bf16.msra.mxu0 0
        %2125 = vmatprep.subr.bf16.mxu0 0
        %2126 = vmatpush2.bf16.msra.mxu0 0
        %2127 = vmatprep.subr.bf16.mxu0 0
        %2128 = vmatpush2.bf16.msra.mxu0 0
        %2129 = vmatprep.subr.bf16.mxu0 0
        %2130 = vmatpush2.bf16.msra.mxu0 0
        %2131 = vmatprep.mubr.bf16.mxu0 0
        %2132 = vmatmul.mubr.bf16.gmra.mxu0 %v1744
        %v2133 = vpop.f32.mrf.mxu0
        %v2134 = vadd.f32 %v1799, %v2133
        %v2135 = vpop.f32.mrf.mxu0
        %v2136 = vadd.f32 %v1803, %v2135
        %v2137 = vpop.f32.mrf.mxu0
        %v2138 = vadd.f32 %v1799, %v2137
        %v2139 = vpop.f32.mrf.mxu0
        %v2140 = vadd.f32 %v1803, %v2139
        %2141 = vmatprep.mubr.bf16.mxu0 0
        %2142 = vmatmul.mubr.bf16.gmra.mxu0 %v1745
        %v2143 = vpop.f32.mrf.mxu0
        %v2144 = vadd.f32 %v1799, %v2143
        %v2145 = vpop.f32.mrf.mxu0
        %v2146 = vadd.f32 %v1803, %v2145
        %v2147 = vpop.f32.mrf.mxu0
        %v2148 = vadd.f32 %v1799, %v2147
        %v2149 = vpop.f32.mrf.mxu0
        %v2150 = vadd.f32 %v1803, %v2149
        %2151 = vmatprep.mubr.bf16.mxu0 0
        %2152 = vmatmul.mubr.bf16.gmra.mxu0 %v1746
        %v2153 = vpop.f32.mrf.mxu0
        %v2154 = vadd.f32 %v1799, %v2153
        %v2155 = vpop.f32.mrf.mxu0
        %v2156 = vadd.f32 %v1803, %v2155
        %v2157 = vpop.f32.mrf.mxu0
        %v2158 = vadd.f32 %v1799, %v2157
        %v2159 = vpop.f32.mrf.mxu0
        %v2160 = vadd.f32 %v1803, %v2159
        %2161 = vmatprep.mubr.bf16.mxu0 0
        %2162 = vmatmul.mubr.bf16.gmra.mxu0 %v1747
        %v2163 = vpop.f32.mrf.mxu0
        %v2164 = vadd.f32 %v1799, %v2163
        %v2165 = vpop.f32.mrf.mxu0
        %v2166 = vadd.f32 %v1803, %v2165
        %v2167 = vpop.f32.mrf.mxu0
        %v2168 = vadd.f32 %v1799, %v2167
        %v2169 = vpop.f32.mrf.mxu0
        %v2170 = vadd.f32 %v1803, %v2169
        %2171 = vmatprep.mubr.bf16.mxu0 0
        %2172 = vmatmul.mubr.bf16.gmra.mxu0 %v1748
        %v2173 = vpop.f32.mrf.mxu0
        %v2174 = vadd.f32 %v1799, %v2173
        %v2175 = vpop.f32.mrf.mxu0
        %v2176 = vadd.f32 %v1803, %v2175
        %v2177 = vpop.f32.mrf.mxu0
        %v2178 = vadd.f32 %v1799, %v2177
        %v2179 = vpop.f32.mrf.mxu0
        %v2180 = vadd.f32 %v1803, %v2179
        %2181 = vmatprep.mubr.bf16.mxu0 0
        %2182 = vmatmul.mubr.bf16.gmra.mxu0 %v1749
        %v2183 = vpop.f32.mrf.mxu0
        %v2184 = vadd.f32 %v1799, %v2183
        %v2185 = vpop.f32.mrf.mxu0
        %v2186 = vadd.f32 %v1803, %v2185
        %v2187 = vpop.f32.mrf.mxu0
        %v2188 = vadd.f32 %v1799, %v2187
        %v2189 = vpop.f32.mrf.mxu0
        %v2190 = vadd.f32 %v1803, %v2189
        %2191 = vmatprep.mubr.bf16.mxu0 0
        %2192 = vmatmul.mubr.bf16.gmra.mxu0 %v1750
        %v2193 = vpop.f32.mrf.mxu0
        %v2194 = vadd.f32 %v1799, %v2193
        %v2195 = vpop.f32.mrf.mxu0
        %v2196 = vadd.f32 %v1803, %v2195
        %v2197 = vpop.f32.mrf.mxu0
        %v2198 = vadd.f32 %v1799, %v2197
        %v2199 = vpop.f32.mrf.mxu0
        %v2200 = vadd.f32 %v1803, %v2199
        %2201 = vmatprep.mubr.bf16.mxu0 0
        %2202 = vmatmul.mubr.bf16.gmra.mxu0 %v1751
        %v2203 = vpop.f32.mrf.mxu0
        %v2204 = vadd.f32 %v1799, %v2203
        %v2205 = vpop.f32.mrf.mxu0
        %v2206 = vadd.f32 %v1803, %v2205
        %v2207 = vpop.f32.mrf.mxu0
        %v2208 = vadd.f32 %v1799, %v2207
        %v2209 = vpop.f32.mrf.mxu0
        %v2210 = vadd.f32 %v1803, %v2209
        %2211 = vmatprep.mubr.bf16.mxu0 0
        %2212 = vmatmul.mubr.bf16.gmra.mxu0 %v1752
        %v2213 = vpop.f32.mrf.mxu0
        %v2214 = vadd.f32 %v1799, %v2213
        %v2215 = vpop.f32.mrf.mxu0
        %v2216 = vadd.f32 %v1803, %v2215
        %v2217 = vpop.f32.mrf.mxu0
        %v2218 = vadd.f32 %v1799, %v2217
        %v2219 = vpop.f32.mrf.mxu0
        %v2220 = vadd.f32 %v1803, %v2219
        %2221 = vmatprep.mubr.bf16.mxu0 0
        %2222 = vmatmul.mubr.bf16.gmra.mxu0 %v1753
        %v2223 = vpop.f32.mrf.mxu0
        %v2224 = vadd.f32 %v1799, %v2223
        %v2225 = vpop.f32.mrf.mxu0
        %v2226 = vadd.f32 %v1803, %v2225
        %v2227 = vpop.f32.mrf.mxu0
        %v2228 = vpop.f32.mrf.mxu0
        %2229 = vdwg.mxu0
        %2230 = vst [vmem:[%s409] sm:$0xff] %v2003
        %2231 = vst [vmem:[%s409 + $0x8] sm:$0xff] %v2005
        %2232 = vst [vmem:[%s409 + $0x10] sm:$0xff] %v2134
        %2233 = vst [vmem:[%s409 + $0x18] sm:$0xff] %v2136
        %2234 = vst [vmem:[%s409 + $0x20] sm:$0xff] %v2007
        %2235 = vst [vmem:[%s409 + $0x28] sm:$0xff] %v2009
        %2236 = vst [vmem:[%s409 + $0x30] sm:$0xff] %v2138
        %2237 = vst [vmem:[%s409 + $0x38] sm:$0xff] %v2140
        %2238 = vst [vmem:[%s409 + $0x40] sm:$0xff] %v2013
        %2239 = vst [vmem:[%s409 + $0x48] sm:$0xff] %v2015
        %2240 = vst [vmem:[%s409 + $0x50] sm:$0xff] %v2144
        %2241 = vst [vmem:[%s409 + $0x58] sm:$0xff] %v2146
        %2242 = vst [vmem:[%s409 + $0x60] sm:$0xff] %v2017
        %2243 = vst [vmem:[%s409 + $0x68] sm:$0xff] %v2019
        %2244 = vst [vmem:[%s409 + $0x70] sm:$0xff] %v2148
        %2245 = vst [vmem:[%s409 + $0x78] sm:$0xff] %v2150
        %2246 = vst [vmem:[%s409 + $0x80] sm:$0xff] %v2023
        %2247 = vst [vmem:[%s409 + $0x88] sm:$0xff] %v2025
        %2248 = vst [vmem:[%s409 + $0x90] sm:$0xff] %v2154
        %2249 = vst [vmem:[%s409 + $0x98] sm:$0xff] %v2156
        %2250 = vst [vmem:[%s409 + $0xa0] sm:$0xff] %v2027
        %2251 = vst [vmem:[%s409 + $0xa8] sm:$0xff] %v2029
        %2252 = vst [vmem:[%s409 + $0xb0] sm:$0xff] %v2158
        %2253 = vst [vmem:[%s409 + $0xb8] sm:$0xff] %v2160
        %2254 = vst [vmem:[%s409 + $0xc0] sm:$0xff] %v2033
        %2255 = vst [vmem:[%s409 + $0xc8] sm:$0xff] %v2035
        %2256 = vst [vmem:[%s409 + $0xd0] sm:$0xff] %v2164
        %2257 = vst [vmem:[%s409 + $0xd8] sm:$0xff] %v2166
        %2258 = vst [vmem:[%s409 + $0xe0] sm:$0xff] %v2037
        %2259 = vst [vmem:[%s409 + $0xe8] sm:$0xff] %v2039
        %2260 = vst [vmem:[%s409 + $0xf0] sm:$0xff] %v2168
        %2261 = vst [vmem:[%s409 + $0xf8] sm:$0xff] %v2170
        %2262 = vst [vmem:[%s409 + $0x100] sm:$0xff] %v2043
        %2263 = vst [vmem:[%s409 + $0x108] sm:$0xff] %v2045
        %2264 = vst [vmem:[%s409 + $0x110] sm:$0xff] %v2174
        %2265 = vst [vmem:[%s409 + $0x118] sm:$0xff] %v2176
        %2266 = vst [vmem:[%s409 + $0x120] sm:$0xff] %v2047
        %2267 = vst [vmem:[%s409 + $0x128] sm:$0xff] %v2049
        %2268 = vst [vmem:[%s409 + $0x130] sm:$0xff] %v2178
        %2269 = vst [vmem:[%s409 + $0x138] sm:$0xff] %v2180
        %2270 = vst [vmem:[%s409 + $0x140] sm:$0xff] %v2053
        %2271 = vst [vmem:[%s409 + $0x148] sm:$0xff] %v2055
        %2272 = vst [vmem:[%s409 + $0x150] sm:$0xff] %v2184
        %2273 = vst [vmem:[%s409 + $0x158] sm:$0xff] %v2186
        %2274 = vst [vmem:[%s409 + $0x160] sm:$0xff] %v2057
        %2275 = vst [vmem:[%s409 + $0x168] sm:$0xff] %v2059
        %2276 = vst [vmem:[%s409 + $0x170] sm:$0xff] %v2188
        %2277 = vst [vmem:[%s409 + $0x178] sm:$0xff] %v2190
        %2278 = vst [vmem:[%s409 + $0x180] sm:$0xff] %v2063
        %2279 = vst [vmem:[%s409 + $0x188] sm:$0xff] %v2065
        %2280 = vst [vmem:[%s409 + $0x190] sm:$0xff] %v2194
        %2281 = vst [vmem:[%s409 + $0x198] sm:$0xff] %v2196
        %2282 = vst [vmem:[%s409 + $0x1a0] sm:$0xff] %v2067
        %2283 = vst [vmem:[%s409 + $0x1a8] sm:$0xff] %v2069
        %2284 = vst [vmem:[%s409 + $0x1b0] sm:$0xff] %v2198
        %2285 = vst [vmem:[%s409 + $0x1b8] sm:$0xff] %v2200
        %2286 = vst [vmem:[%s409 + $0x1c0] sm:$0xff] %v2073
        %2287 = vst [vmem:[%s409 + $0x1c8] sm:$0xff] %v2075
        %2288 = vst [vmem:[%s409 + $0x1d0] sm:$0xff] %v2204
        %2289 = vst [vmem:[%s409 + $0x1d8] sm:$0xff] %v2206
        %2290 = vst [vmem:[%s409 + $0x1e0] sm:$0xff] %v2077
        %2291 = vst [vmem:[%s409 + $0x1e8] sm:$0xff] %v2079
        %2292 = vst [vmem:[%s409 + $0x1f0] sm:$0xff] %v2208
        %2293 = vst [vmem:[%s409 + $0x1f8] sm:$0xff] %v2210
        %2294 = vst [vmem:[%s409 + $0x200] sm:$0xff] %v2083
        %2295 = vst [vmem:[%s409 + $0x208] sm:$0xff] %v2085
        %2296 = vst [vmem:[%s409 + $0x210] sm:$0xff] %v2214
        %2297 = vst [vmem:[%s409 + $0x218] sm:$0xff] %v2216
        %2298 = vst [vmem:[%s409 + $0x220] sm:$0xff] %v2087
        %2299 = vst [vmem:[%s409 + $0x228] sm:$0xff] %v2089
        %2300 = vst [vmem:[%s409 + $0x230] sm:$0xff] %v2218
        %2301 = vst [vmem:[%s409 + $0x238] sm:$0xff] %v2220
        %2302 = vst [vmem:[%s409 + $0x240] sm:$0xff] %v2093
        %2303 = vst [vmem:[%s409 + $0x248] sm:$0xff] %v2095
        %2304 = vst [vmem:[%s409 + $0x250] sm:$0xff] %v2224
        %2305 = vst [vmem:[%s409 + $0x258] sm:$0xff] %v2226
        %s2306 = sand.u32 %s230, 1
        %s2307 = scalar_lea.sflag [#allocation4], %s2306
        %s2308 = sand.u32 %s230, 1
        %s2309 = smul.addr %s2308, 608
        %s2310 = scalar_lea.vmem [#allocation11], %s2309
        // Predicated region
        $region77: #{tpu_custom_call.1} parent=55 // pred_check
          %p2311 = pneg %p240
        $region78: #{tpu_custom_call.1} parent=55 // pred_check_branch
          %2313 = sbr.rel (%p2311) target = $region80
        $region79: #{tpu_custom_call.1} parent=55 // pred_region
          %s2314 = smul.u32 19, %s28
          %s2316 = ssub.s32 9728, 9728
          %2317 = vsyncadd %s2307, %s2316
          %s2318 = smul.addr %s2314, 4
          %s2319 = smul.addr %s2318, 128
          %s2320 = scalar_lea.hbm %s9, %s2319
          %s2321 = sshll.u32 %s2310, 4
          %s2322 = int_to_ptr.vmem [resolvable:$true] %s2321
          %2327 = dma.vmem_to_hbm [thread:$0]  %s2322, 9728, %s2320, %s2307, 512, 512, 32
        $region80: #{tpu_custom_call.1} parent=55 // pred_fallthru
          _
      $region56: #{tpu_custom_call.1} parent=5 // pred_fallthru
        _
      %p2328 = scmp.le.s32.totalorder 2, %s23
      // Predicated region
      $region81: #{tpu_custom_call.1} parent=5 // pred_check
        %p2329 = pneg %p2328
      $region82: #{tpu_custom_call.1} parent=5 // pred_check_branch
        %2331 = sbr.rel (%p2329) target = $region84
      $region83: #{tpu_custom_call.1} parent=5 // pred_region
        %s2332 = ssub.s32 %s23, 2
        // Predicated region
        $region85: #{tpu_custom_call.1} parent=83 // pred_check
          %p2333 = pneg %p246
        $region86: #{tpu_custom_call.1} parent=83 // pred_check_branch
          %2335 = sbr.rel (%p2333) target = $region88
        $region87: #{tpu_custom_call.1} parent=83 // pred_region
          %s2336 = sand.u32 %s231, 1
          %s2337 = scalar_lea.sflag [#allocation4], %s2336
          %s2338 = sand.u32 %s231, 1
          %s2339 = smul.addr %s2338, 608
          %s2340 = scalar_lea.vmem [#allocation11], %s2339
          %2341 = dma.done %s2337, 9728
        $region88: #{tpu_custom_call.1} parent=83 // pred_fallthru
          _
      $region84: #{tpu_custom_call.1} parent=5 // pred_fallthru
        _
    $region6: #{tpu_custom_call.1} parent=1 // loop_footer
      %s27 = sadd.s32 1, %s23
    $region7: #{tpu_custom_call.1} parent=1 // loop_footer_branch
      %22 = sbr.rel target = $region3
    $region8: #{tpu_custom_call.1} parent=1 // loop_exit
      _
    %2342 = vsyncpa [#allocation3], 1
    %s2343 = scalar_lea.sflag [#allocation3], 1
    %2344 = vsyncpa %s2343, 1
    %2345 = vsyncpa [#allocation6], 1
    %2346 = vsyncpa [#allocation9], 1
    %2347 = vsyncpa [#allocation4], 1
    %s2348 = scalar_lea.sflag [#allocation4], 1
    %2349 = vsyncpa %s2348, 1

</llo_original>
